<compile_context>
chip_gen: v7x
topology: tpu7x:2x2x1
jax: 0.10.0
libtpu: 0.0.40
codegen_flags: <defaults>
</compile_context>

<pallas_src>
import functools

import jax
import jax.numpy as jnp
from jax.experimental import pallas as pl
from jax.experimental.pallas import tpu as pltpu


def _grouped_conv3d(x, w, groups):
    """PyTorch-style grouped Conv3d, stride 1, 'same' padding for odd kernels."""
    kd = w.shape[2]
    pad = (kd - 1) // 2
    return jax.lax.conv_general_dilated(
        x, w,
        window_strides=(1, 1, 1),
        padding=((pad, pad),) * 3,
        dimension_numbers=("NCDHW", "OIDHW", "NCDHW"),
        feature_group_count=groups,
    )


def _tca_attn_proj_kernel(wp_ref, q_ref, k_ref, v_ref, o_ref, *,
                          num_heads, head_dim, scale):
    """Fused multi-head attention over depth T + grouped 1x1 projection.

    q_ref/k_ref/v_ref: (C, T, TILE_S) VMEM, C = num_heads * head_dim,
        lanes = spatial, sublanes = depth.
    wp_ref: (2*C,) proj weights in SMEM.
    o_ref: (2*C, T, TILE_S); out[2c] = wp[2c]*attn_out[c],
                             out[2c+1] = wp[2c+1]*attn_out[c].
    """
    for h in range(num_heads):
        sl = pl.ds(h * head_dim, head_dim)
        qh = q_ref[sl].astype(jnp.float32) * scale      # (hd, T, S)
        kh = k_ref[sl].astype(jnp.float32)              # (hd, T, S)
        vh = v_ref[sl].astype(jnp.float32)              # (hd, T, S)

        # logits[j, i, s] = sum_d kh[d, j, s] * qh[d, i, s]
        # Key index j sits on the MAJOR axis, so every softmax reduction below
        # is a cheap VPU add/max over (T, S) slabs (no cross-sublane XLU).
        logits = jnp.sum(kh[:, :, None, :] * qh[:, None, :, :], axis=0)   # (Tj, Ti, S)

        # numerically stable softmax over j (axis 0), deferred normalization
        m = jnp.max(logits, axis=0)                                       # (Ti, S)
        p = jnp.exp(logits - m[None, :, :])                               # (Tj, Ti, S)
        l = jnp.sum(p, axis=0)                                            # (Ti, S)

        # o_un[d, i, s] = sum_j p[j, i, s] * vh[d, j, s]
        o_un = jnp.sum(p[None, :, :, :] * vh[:, :, None, :], axis=1)      # (hd, Ti, S)
        inv_l = pl.reciprocal(l)                                          # exact 1/l
        oh = o_un * inv_l[None, :, :]                                     # (hd, Ti, S)

        # fused grouped 1x1 projection: channel c -> output channels 2c, 2c+1
        for d in range(head_dim):
            c = h * head_dim + d
            row = oh[d]                                                   # (T, S)
            o_ref[2 * c] = (row * wp_ref[2 * c]).astype(o_ref.dtype)
            o_ref[2 * c + 1] = (row * wp_ref[2 * c + 1]).astype(o_ref.dtype)


def _pick_spatial_tile(s, max_tile=1024):
    """Largest multiple of 128 that divides S (lane-dense, no padding)."""
    best = None
    t = 128
    while t <= min(s, max_tile):
        if s % t == 0:
            best = t
        t += 128
    return best if best is not None else s   # full extent is always legal


@functools.partial(jax.jit, static_argnames=("num_head",))
def tca_forward(x, last, wq, wk, wv, wproj, *, num_head):
    """Full TCA forward: grouped convs (XLA) + Pallas fused attention/proj."""
    dim = x.shape[1]
    C = dim // 2
    num_heads = dim // num_head
    head_dim = C // num_heads              # = num_head // 2
    scale = float(num_head) ** (-0.5)      # matches PyTorch: head_dim = num_head

    q = _grouped_conv3d(x, wq, C)          # (b, C, T, h, w)
    k = _grouped_conv3d(last, wk, C)
    v = _grouped_conv3d(last, wv, C)

    b, _, T, h, w = q.shape
    S = h * w
    q2 = q.reshape(b, C, T, S)             # free reshape: spatial on lanes
    k2 = k.reshape(b, C, T, S)
    v2 = v.reshape(b, C, T, S)
    wp_flat = wproj.reshape(dim).astype(jnp.float32)

    tile_s = _pick_spatial_tile(S)
    grid = (b, S // tile_s)

    kernel = functools.partial(_tca_attn_proj_kernel, num_heads=num_heads,
                               head_dim=head_dim, scale=scale)

    n_tok = b * S
    cost = pl.CostEstimate(
        flops=int(n_tok * num_heads * 8 * head_dim * T * T + n_tok * dim * T),
        transcendentals=int(n_tok * num_heads * T * T),
        bytes_accessed=int((3 * C + dim) * T * n_tok * 4 + dim * 4),
    )

    out = pl.pallas_call(
        kernel,
        out_shape=jax.ShapeDtypeStruct((b, dim, T, S), q2.dtype),
        grid_spec=pltpu.PrefetchScalarGridSpec(
            num_scalar_prefetch=0,
            grid=grid,
            in_specs=[
                pl.BlockSpec(memory_space=pltpu.MemorySpace.SMEM),   # proj weights
                pl.BlockSpec((None, C, T, tile_s), lambda bi, si: (bi, 0, 0, si)),
                pl.BlockSpec((None, C, T, tile_s), lambda bi, si: (bi, 0, 0, si)),
                pl.BlockSpec((None, C, T, tile_s), lambda bi, si: (bi, 0, 0, si)),
            ],
            out_specs=pl.BlockSpec((None, dim, T, tile_s),
                                   lambda bi, si: (bi, 0, 0, si)),
        ),
        compiler_params=pltpu.CompilerParams(
            dimension_semantics=("parallel", "parallel")),
        cost_estimate=cost,
    )(wp_flat, q2, k2, v2)

    return out.reshape(b, dim, T, h, w)


def _tca_reference(x, last, wq, wk, wv, wproj, num_head):
    """Pure-JAX reference mirroring the PyTorch forward exactly."""
    dim = x.shape[1]
    C = dim // 2
    num_heads = dim // num_head
    hd = C // num_heads
    scale = float(num_head) ** (-0.5)

    q = _grouped_conv3d(x, wq, C)
    k = _grouped_conv3d(last, wk, C)
    v = _grouped_conv3d(last, wv, C)
    b, _, T, h, w = q.shape

    def rearr(t):  # 'b c B h w -> (b h w) B c'
        return jnp.transpose(t, (0, 3, 4, 2, 1)).reshape(b * h * w, T, C)

    qn, kn, vn = rearr(q), rearr(k), rearr(v)
    n = qn.shape[0]

    def heads(t):  # (n, B, C) -> (n, heads, B, hd)
        return jnp.transpose(t.reshape(n, T, num_heads, hd), (0, 2, 1, 3))

    qh = heads(qn) * scale
    kh = heads(kn)
    vh = heads(vn)
    attn = jnp.einsum("nhid,nhjd->nhij", qh, kh,
                      precision=jax.lax.Precision.HIGHEST)
    attn = jax.nn.softmax(attn, axis=-1)
    o = jnp.einsum("nhij,nhjd->nhid", attn, vh,
                   precision=jax.lax.Precision.HIGHEST)
    o = jnp.transpose(o, (0, 2, 1, 3)).reshape(n, T, C)
    # '(b h w) B c -> b c B h w'
    o = jnp.transpose(o.reshape(b, h, w, T, C), (0, 4, 3, 1, 2))
    # grouped 1x1x1 projection
    return _grouped_conv3d(o, wproj, C)


if __name__ == "__main__":
    key = jax.random.PRNGKey(0)
    b, dim, depth, h, w = 2, 32, 4, 8, 16      # spatial h*w = 128 (lane-dense)
    num_head = 8                               # -> num_heads=4, per-head dim=4
    C = dim // 2

    k0, k1, k2, k3, k4, k5 = jax.random.split(key, 6)
    x = jax.random.normal(k0, (b, dim, depth, h, w), dtype=jnp.float32)
    last = jax.random.normal(k1, (b, dim, depth, h, w), dtype=jnp.float32)
    wq = 0.1 * jax.random.normal(k2, (C, 2, 3, 3, 3), dtype=jnp.float32)
    wk = 0.1 * jax.random.normal(k3, (C, 2, 3, 3, 3), dtype=jnp.float32)
    wv = 0.1 * jax.random.normal(k4, (C, 2, 3, 3, 3), dtype=jnp.float32)
    wp = 0.1 * jax.random.normal(k5, (dim, 1, 1, 1, 1), dtype=jnp.float32)

    out = tca_forward(x, last, wq, wk, wv, wp, num_head=num_head)
    out = jax.block_until_ready(out)

    ref = _tca_reference(x, last, wq, wk, wv, wp, num_head)
    assert out.shape == (b, dim, depth, h, w)
    err = float(jnp.max(jnp.abs(out - ref)))
    assert err < 1e-3, f"mismatch vs reference: {err}"

    print("KERNEL_OK")
</pallas_src>

<mosaic_0001>
module attributes {stable_mosaic.version = 11 : i64} {
  func.func @_tca_attn_proj_kernel(%arg0: i32, %arg1: i32, %arg2: memref<32xf32, #tpu.memory_space<smem>>, %arg3: memref<1x16x4x128xf32, #tpu.memory_space<vmem>>, %arg4: memref<1x16x4x128xf32, #tpu.memory_space<vmem>>, %arg5: memref<1x16x4x128xf32, #tpu.memory_space<vmem>>, %arg6: memref<1x32x4x128xf32, #tpu.memory_space<vmem>>) attributes {dimension_semantics = [#tpu.dimension_semantics<parallel>, #tpu.dimension_semantics<parallel>], iteration_bounds = array<i64: 2, 1>, scalar_prefetch = 0 : i64, scratch_operands = 0 : i64, tpu.core_type = #tpu.core_type<tc>, window_params = [{transform_indices = @transform_0, window_bounds = array<i64: 32>}, {transform_indices = @transform_1, window_bounds = array<i64: 1, 16, 4, 128>}, {transform_indices = @transform_2, window_bounds = array<i64: 1, 16, 4, 128>}, {transform_indices = @transform_3, window_bounds = array<i64: 1, 16, 4, 128>}, {transform_indices = @transform_4, window_bounds = array<i64: 1, 32, 4, 128>}]} {
    %c0 = arith.constant 0 : index
    %c0_0 = arith.constant 0 : index
    %c0_1 = arith.constant 0 : index
    %c0_2 = arith.constant 0 : index
    %0 = vector.load %arg3[%c0, %c0_0, %c0_1, %c0_2] : memref<1x16x4x128xf32, #tpu.memory_space<vmem>>, vector<1x4x4x128xf32>
    %1 = vector.shape_cast %0 : vector<1x4x4x128xf32> to vector<4x4x128xf32>
    %cst = arith.constant 0.353553385 : f32
    %2 = vector.broadcast %cst : f32 to vector<4x4x128xf32>
    %3 = arith.mulf %1, %2 : vector<4x4x128xf32>
    %c0_3 = arith.constant 0 : index
    %c0_4 = arith.constant 0 : index
    %c0_5 = arith.constant 0 : index
    %c0_6 = arith.constant 0 : index
    %4 = vector.load %arg4[%c0_3, %c0_4, %c0_5, %c0_6] : memref<1x16x4x128xf32, #tpu.memory_space<vmem>>, vector<1x4x4x128xf32>
    %5 = vector.shape_cast %4 : vector<1x4x4x128xf32> to vector<4x4x128xf32>
    %c0_7 = arith.constant 0 : index
    %c0_8 = arith.constant 0 : index
    %c0_9 = arith.constant 0 : index
    %c0_10 = arith.constant 0 : index
    %6 = vector.load %arg5[%c0_7, %c0_8, %c0_9, %c0_10] : memref<1x16x4x128xf32, #tpu.memory_space<vmem>>, vector<1x4x4x128xf32>
    %7 = vector.shape_cast %6 : vector<1x4x4x128xf32> to vector<4x4x128xf32>
    %8 = vector.shape_cast %5 : vector<4x4x128xf32> to vector<4x4x1x128xf32>
    %9 = vector.shape_cast %3 : vector<4x4x128xf32> to vector<4x1x4x128xf32>
    %10 = vector.broadcast %8 : vector<4x4x1x128xf32> to vector<4x4x4x128xf32>
    %11 = vector.broadcast %9 : vector<4x1x4x128xf32> to vector<4x4x4x128xf32>
    %12 = arith.mulf %10, %11 : vector<4x4x4x128xf32>
    %cst_11 = arith.constant dense<0.000000e+00> : vector<4x4x128xf32>
    %13 = vector.multi_reduction <add>, %12, %cst_11 [0] : vector<4x4x4x128xf32> to vector<4x4x128xf32>
    %cst_12 = arith.constant dense<0xFF800000> : vector<4x128xf32>
    %14 = vector.multi_reduction <maximumf>, %13, %cst_12 [0] : vector<4x4x128xf32> to vector<4x128xf32>
    %15 = vector.shape_cast %14 : vector<4x128xf32> to vector<1x4x128xf32>
    %16 = vector.broadcast %15 : vector<1x4x128xf32> to vector<4x4x128xf32>
    %17 = arith.subf %13, %16 : vector<4x4x128xf32>
    %18 = math.exp %17 : vector<4x4x128xf32>
    %cst_13 = arith.constant dense<0.000000e+00> : vector<4x128xf32>
    %19 = vector.multi_reduction <add>, %18, %cst_13 [0] : vector<4x4x128xf32> to vector<4x128xf32>
    %20 = vector.shape_cast %18 : vector<4x4x128xf32> to vector<1x4x4x128xf32>
    %21 = vector.shape_cast %7 : vector<4x4x128xf32> to vector<4x4x1x128xf32>
    %22 = vector.broadcast %20 : vector<1x4x4x128xf32> to vector<4x4x4x128xf32>
    %23 = vector.broadcast %21 : vector<4x4x1x128xf32> to vector<4x4x4x128xf32>
    %24 = arith.mulf %22, %23 : vector<4x4x4x128xf32>
    %cst_14 = arith.constant dense<0.000000e+00> : vector<4x4x128xf32>
    %25 = vector.multi_reduction <add>, %24, %cst_14 [1] : vector<4x4x4x128xf32> to vector<4x4x128xf32>
    %26 = tpu.reciprocal %19 : vector<4x128xf32> -> vector<4x128xf32>
    %27 = vector.shape_cast %26 : vector<4x128xf32> to vector<1x4x128xf32>
    %28 = vector.broadcast %27 : vector<1x4x128xf32> to vector<4x4x128xf32>
    %29 = arith.mulf %25, %28 : vector<4x4x128xf32>
    %30 = vector.extract_strided_slice %29 {offsets = [0, 0, 0], sizes = [1, 4, 128], strides = [1, 1, 1]} : vector<4x4x128xf32> to vector<1x4x128xf32>
    %31 = vector.shape_cast %30 : vector<1x4x128xf32> to vector<4x128xf32>
    %c0_15 = arith.constant 0 : index
    %32 = memref.load %arg2[%c0_15] : memref<32xf32, #tpu.memory_space<smem>>
    %33 = vector.broadcast %32 : f32 to vector<4x128xf32>
    %34 = arith.mulf %31, %33 : vector<4x128xf32>
    %c0_16 = arith.constant 0 : index
    %c0_17 = arith.constant 0 : index
    %c0_18 = arith.constant 0 : index
    %c0_19 = arith.constant 0 : index
    %35 = vector.load %arg6[%c0_16, %c0_17, %c0_18, %c0_19] : memref<1x32x4x128xf32, #tpu.memory_space<vmem>>, vector<1x1x4x128xf32>
    %36 = vector.shape_cast %35 : vector<1x1x4x128xf32> to vector<4x128xf32>
    %37 = vector.shape_cast %34 : vector<4x128xf32> to vector<1x1x4x128xf32>
    tpu.vector_store %arg6[%c0_16, %c0_17, %c0_18, %c0_19], %37 {strides = array<i32>} : memref<1x32x4x128xf32, #tpu.memory_space<vmem>>, vector<1x1x4x128xf32>,
    %c1 = arith.constant 1 : index
    %38 = memref.load %arg2[%c1] : memref<32xf32, #tpu.memory_space<smem>>
    %39 = vector.broadcast %38 : f32 to vector<4x128xf32>
    %40 = arith.mulf %31, %39 : vector<4x128xf32>
    %c0_20 = arith.constant 0 : index
    %c1_21 = arith.constant 1 : index
    %c0_22 = arith.constant 0 : index
    %c0_23 = arith.constant 0 : index
    %41 = vector.load %arg6[%c0_20, %c1_21, %c0_22, %c0_23] : memref<1x32x4x128xf32, #tpu.memory_space<vmem>>, vector<1x1x4x128xf32>
    %42 = vector.shape_cast %41 : vector<1x1x4x128xf32> to vector<4x128xf32>
    %43 = vector.shape_cast %40 : vector<4x128xf32> to vector<1x1x4x128xf32>
    tpu.vector_store %arg6[%c0_20, %c1_21, %c0_22, %c0_23], %43 {strides = array<i32>} : memref<1x32x4x128xf32, #tpu.memory_space<vmem>>, vector<1x1x4x128xf32>,
    %44 = vector.extract_strided_slice %29 {offsets = [1, 0, 0], sizes = [1, 4, 128], strides = [1, 1, 1]} : vector<4x4x128xf32> to vector<1x4x128xf32>
    %45 = vector.shape_cast %44 : vector<1x4x128xf32> to vector<4x128xf32>
    %c2 = arith.constant 2 : index
    %46 = memref.load %arg2[%c2] : memref<32xf32, #tpu.memory_space<smem>>
    %47 = vector.broadcast %46 : f32 to vector<4x128xf32>
    %48 = arith.mulf %45, %47 : vector<4x128xf32>
    %c0_24 = arith.constant 0 : index
    %c2_25 = arith.constant 2 : index
    %c0_26 = arith.constant 0 : index
    %c0_27 = arith.constant 0 : index
    %49 = vector.load %arg6[%c0_24, %c2_25, %c0_26, %c0_27] : memref<1x32x4x128xf32, #tpu.memory_space<vmem>>, vector<1x1x4x128xf32>
    %50 = vector.shape_cast %49 : vector<1x1x4x128xf32> to vector<4x128xf32>
    %51 = vector.shape_cast %48 : vector<4x128xf32> to vector<1x1x4x128xf32>
    tpu.vector_store %arg6[%c0_24, %c2_25, %c0_26, %c0_27], %51 {strides = array<i32>} : memref<1x32x4x128xf32, #tpu.memory_space<vmem>>, vector<1x1x4x128xf32>,
    %c3 = arith.constant 3 : index
    %52 = memref.load %arg2[%c3] : memref<32xf32, #tpu.memory_space<smem>>
    %53 = vector.broadcast %52 : f32 to vector<4x128xf32>
    %54 = arith.mulf %45, %53 : vector<4x128xf32>
    %c0_28 = arith.constant 0 : index
    %c3_29 = arith.constant 3 : index
    %c0_30 = arith.constant 0 : index
    %c0_31 = arith.constant 0 : index
    %55 = vector.load %arg6[%c0_28, %c3_29, %c0_30, %c0_31] : memref<1x32x4x128xf32, #tpu.memory_space<vmem>>, vector<1x1x4x128xf32>
    %56 = vector.shape_cast %55 : vector<1x1x4x128xf32> to vector<4x128xf32>
    %57 = vector.shape_cast %54 : vector<4x128xf32> to vector<1x1x4x128xf32>
    tpu.vector_store %arg6[%c0_28, %c3_29, %c0_30, %c0_31], %57 {strides = array<i32>} : memref<1x32x4x128xf32, #tpu.memory_space<vmem>>, vector<1x1x4x128xf32>,
    %58 = vector.extract_strided_slice %29 {offsets = [2, 0, 0], sizes = [1, 4, 128], strides = [1, 1, 1]} : vector<4x4x128xf32> to vector<1x4x128xf32>
    %59 = vector.shape_cast %58 : vector<1x4x128xf32> to vector<4x128xf32>
    %c4 = arith.constant 4 : index
    %60 = memref.load %arg2[%c4] : memref<32xf32, #tpu.memory_space<smem>>
    %61 = vector.broadcast %60 : f32 to vector<4x128xf32>
    %62 = arith.mulf %59, %61 : vector<4x128xf32>
    %c0_32 = arith.constant 0 : index
    %c4_33 = arith.constant 4 : index
    %c0_34 = arith.constant 0 : index
    %c0_35 = arith.constant 0 : index
    %63 = vector.load %arg6[%c0_32, %c4_33, %c0_34, %c0_35] : memref<1x32x4x128xf32, #tpu.memory_space<vmem>>, vector<1x1x4x128xf32>
    %64 = vector.shape_cast %63 : vector<1x1x4x128xf32> to vector<4x128xf32>
    %65 = vector.shape_cast %62 : vector<4x128xf32> to vector<1x1x4x128xf32>
    tpu.vector_store %arg6[%c0_32, %c4_33, %c0_34, %c0_35], %65 {strides = array<i32>} : memref<1x32x4x128xf32, #tpu.memory_space<vmem>>, vector<1x1x4x128xf32>,
    %c5 = arith.constant 5 : index
    %66 = memref.load %arg2[%c5] : memref<32xf32, #tpu.memory_space<smem>>
    %67 = vector.broadcast %66 : f32 to vector<4x128xf32>
    %68 = arith.mulf %59, %67 : vector<4x128xf32>
    %c0_36 = arith.constant 0 : index
    %c5_37 = arith.constant 5 : index
    %c0_38 = arith.constant 0 : index
    %c0_39 = arith.constant 0 : index
    %69 = vector.load %arg6[%c0_36, %c5_37, %c0_38, %c0_39] : memref<1x32x4x128xf32, #tpu.memory_space<vmem>>, vector<1x1x4x128xf32>
    %70 = vector.shape_cast %69 : vector<1x1x4x128xf32> to vector<4x128xf32>
    %71 = vector.shape_cast %68 : vector<4x128xf32> to vector<1x1x4x128xf32>
    tpu.vector_store %arg6[%c0_36, %c5_37, %c0_38, %c0_39], %71 {strides = array<i32>} : memref<1x32x4x128xf32, #tpu.memory_space<vmem>>, vector<1x1x4x128xf32>,
    %72 = vector.extract_strided_slice %29 {offsets = [3, 0, 0], sizes = [1, 4, 128], strides = [1, 1, 1]} : vector<4x4x128xf32> to vector<1x4x128xf32>
    %73 = vector.shape_cast %72 : vector<1x4x128xf32> to vector<4x128xf32>
    %c6 = arith.constant 6 : index
    %74 = memref.load %arg2[%c6] : memref<32xf32, #tpu.memory_space<smem>>
    %75 = vector.broadcast %74 : f32 to vector<4x128xf32>
    %76 = arith.mulf %73, %75 : vector<4x128xf32>
    %c0_40 = arith.constant 0 : index
    %c6_41 = arith.constant 6 : index
    %c0_42 = arith.constant 0 : index
    %c0_43 = arith.constant 0 : index
    %77 = vector.load %arg6[%c0_40, %c6_41, %c0_42, %c0_43] : memref<1x32x4x128xf32, #tpu.memory_space<vmem>>, vector<1x1x4x128xf32>
    %78 = vector.shape_cast %77 : vector<1x1x4x128xf32> to vector<4x128xf32>
    %79 = vector.shape_cast %76 : vector<4x128xf32> to vector<1x1x4x128xf32>
    tpu.vector_store %arg6[%c0_40, %c6_41, %c0_42, %c0_43], %79 {strides = array<i32>} : memref<1x32x4x128xf32, #tpu.memory_space<vmem>>, vector<1x1x4x128xf32>,
    %c7 = arith.constant 7 : index
    %80 = memref.load %arg2[%c7] : memref<32xf32, #tpu.memory_space<smem>>
    %81 = vector.broadcast %80 : f32 to vector<4x128xf32>
    %82 = arith.mulf %73, %81 : vector<4x128xf32>
    %c0_44 = arith.constant 0 : index
    %c7_45 = arith.constant 7 : index
    %c0_46 = arith.constant 0 : index
    %c0_47 = arith.constant 0 : index
    %83 = vector.load %arg6[%c0_44, %c7_45, %c0_46, %c0_47] : memref<1x32x4x128xf32, #tpu.memory_space<vmem>>, vector<1x1x4x128xf32>
    %84 = vector.shape_cast %83 : vector<1x1x4x128xf32> to vector<4x128xf32>
    %85 = vector.shape_cast %82 : vector<4x128xf32> to vector<1x1x4x128xf32>
    tpu.vector_store %arg6[%c0_44, %c7_45, %c0_46, %c0_47], %85 {strides = array<i32>} : memref<1x32x4x128xf32, #tpu.memory_space<vmem>>, vector<1x1x4x128xf32>,
    %c0_48 = arith.constant 0 : index
    %c4_49 = arith.constant 4 : index
    %c0_50 = arith.constant 0 : index
    %c0_51 = arith.constant 0 : index
    %86 = vector.load %arg3[%c0_48, %c4_49, %c0_50, %c0_51] : memref<1x16x4x128xf32, #tpu.memory_space<vmem>>, vector<1x4x4x128xf32>
    %87 = vector.shape_cast %86 : vector<1x4x4x128xf32> to vector<4x4x128xf32>
    %cst_52 = arith.constant 0.353553385 : f32
    %88 = vector.broadcast %cst_52 : f32 to vector<4x4x128xf32>
    %89 = arith.mulf %87, %88 : vector<4x4x128xf32>
    %c0_53 = arith.constant 0 : index
    %c4_54 = arith.constant 4 : index
    %c0_55 = arith.constant 0 : index
    %c0_56 = arith.constant 0 : index
    %90 = vector.load %arg4[%c0_53, %c4_54, %c0_55, %c0_56] : memref<1x16x4x128xf32, #tpu.memory_space<vmem>>, vector<1x4x4x128xf32>
    %91 = vector.shape_cast %90 : vector<1x4x4x128xf32> to vector<4x4x128xf32>
    %c0_57 = arith.constant 0 : index
    %c4_58 = arith.constant 4 : index
    %c0_59 = arith.constant 0 : index
    %c0_60 = arith.constant 0 : index
    %92 = vector.load %arg5[%c0_57, %c4_58, %c0_59, %c0_60] : memref<1x16x4x128xf32, #tpu.memory_space<vmem>>, vector<1x4x4x128xf32>
    %93 = vector.shape_cast %92 : vector<1x4x4x128xf32> to vector<4x4x128xf32>
    %94 = vector.shape_cast %91 : vector<4x4x128xf32> to vector<4x4x1x128xf32>
    %95 = vector.shape_cast %89 : vector<4x4x128xf32> to vector<4x1x4x128xf32>
    %96 = vector.broadcast %94 : vector<4x4x1x128xf32> to vector<4x4x4x128xf32>
    %97 = vector.broadcast %95 : vector<4x1x4x128xf32> to vector<4x4x4x128xf32>
    %98 = arith.mulf %96, %97 : vector<4x4x4x128xf32>
    %cst_61 = arith.constant dense<0.000000e+00> : vector<4x4x128xf32>
    %99 = vector.multi_reduction <add>, %98, %cst_61 [0] : vector<4x4x4x128xf32> to vector<4x4x128xf32>
    %cst_62 = arith.constant dense<0xFF800000> : vector<4x128xf32>
    %100 = vector.multi_reduction <maximumf>, %99, %cst_62 [0] : vector<4x4x128xf32> to vector<4x128xf32>
    %101 = vector.shape_cast %100 : vector<4x128xf32> to vector<1x4x128xf32>
    %102 = vector.broadcast %101 : vector<1x4x128xf32> to vector<4x4x128xf32>
    %103 = arith.subf %99, %102 : vector<4x4x128xf32>
    %104 = math.exp %103 : vector<4x4x128xf32>
    %cst_63 = arith.constant dense<0.000000e+00> : vector<4x128xf32>
    %105 = vector.multi_reduction <add>, %104, %cst_63 [0] : vector<4x4x128xf32> to vector<4x128xf32>
    %106 = vector.shape_cast %104 : vector<4x4x128xf32> to vector<1x4x4x128xf32>
    %107 = vector.shape_cast %93 : vector<4x4x128xf32> to vector<4x4x1x128xf32>
    %108 = vector.broadcast %106 : vector<1x4x4x128xf32> to vector<4x4x4x128xf32>
    %109 = vector.broadcast %107 : vector<4x4x1x128xf32> to vector<4x4x4x128xf32>
    %110 = arith.mulf %108, %109 : vector<4x4x4x128xf32>
    %cst_64 = arith.constant dense<0.000000e+00> : vector<4x4x128xf32>
    %111 = vector.multi_reduction <add>, %110, %cst_64 [1] : vector<4x4x4x128xf32> to vector<4x4x128xf32>
    %112 = tpu.reciprocal %105 : vector<4x128xf32> -> vector<4x128xf32>
    %113 = vector.shape_cast %112 : vector<4x128xf32> to vector<1x4x128xf32>
    %114 = vector.broadcast %113 : vector<1x4x128xf32> to vector<4x4x128xf32>
    %115 = arith.mulf %111, %114 : vector<4x4x128xf32>
    %116 = vector.extract_strided_slice %115 {offsets = [0, 0, 0], sizes = [1, 4, 128], strides = [1, 1, 1]} : vector<4x4x128xf32> to vector<1x4x128xf32>
    %117 = vector.shape_cast %116 : vector<1x4x128xf32> to vector<4x128xf32>
    %c8 = arith.constant 8 : index
    %118 = memref.load %arg2[%c8] : memref<32xf32, #tpu.memory_space<smem>>
    %119 = vector.broadcast %118 : f32 to vector<4x128xf32>
    %120 = arith.mulf %117, %119 : vector<4x128xf32>
    %c0_65 = arith.constant 0 : index
    %c8_66 = arith.constant 8 : index
    %c0_67 = arith.constant 0 : index
    %c0_68 = arith.constant 0 : index
    %121 = vector.load %arg6[%c0_65, %c8_66, %c0_67, %c0_68] : memref<1x32x4x128xf32, #tpu.memory_space<vmem>>, vector<1x1x4x128xf32>
    %122 = vector.shape_cast %121 : vector<1x1x4x128xf32> to vector<4x128xf32>
    %123 = vector.shape_cast %120 : vector<4x128xf32> to vector<1x1x4x128xf32>
    tpu.vector_store %arg6[%c0_65, %c8_66, %c0_67, %c0_68], %123 {strides = array<i32>} : memref<1x32x4x128xf32, #tpu.memory_space<vmem>>, vector<1x1x4x128xf32>,
    %c9 = arith.constant 9 : index
    %124 = memref.load %arg2[%c9] : memref<32xf32, #tpu.memory_space<smem>>
    %125 = vector.broadcast %124 : f32 to vector<4x128xf32>
    %126 = arith.mulf %117, %125 : vector<4x128xf32>
    %c0_69 = arith.constant 0 : index
    %c9_70 = arith.constant 9 : index
    %c0_71 = arith.constant 0 : index
    %c0_72 = arith.constant 0 : index
    %127 = vector.load %arg6[%c0_69, %c9_70, %c0_71, %c0_72] : memref<1x32x4x128xf32, #tpu.memory_space<vmem>>, vector<1x1x4x128xf32>
    %128 = vector.shape_cast %127 : vector<1x1x4x128xf32> to vector<4x128xf32>
    %129 = vector.shape_cast %126 : vector<4x128xf32> to vector<1x1x4x128xf32>
    tpu.vector_store %arg6[%c0_69, %c9_70, %c0_71, %c0_72], %129 {strides = array<i32>} : memref<1x32x4x128xf32, #tpu.memory_space<vmem>>, vector<1x1x4x128xf32>,
    %130 = vector.extract_strided_slice %115 {offsets = [1, 0, 0], sizes = [1, 4, 128], strides = [1, 1, 1]} : vector<4x4x128xf32> to vector<1x4x128xf32>
    %131 = vector.shape_cast %130 : vector<1x4x128xf32> to vector<4x128xf32>
    %c10 = arith.constant 10 : index
    %132 = memref.load %arg2[%c10] : memref<32xf32, #tpu.memory_space<smem>>
    %133 = vector.broadcast %132 : f32 to vector<4x128xf32>
    %134 = arith.mulf %131, %133 : vector<4x128xf32>
    %c0_73 = arith.constant 0 : index
    %c10_74 = arith.constant 10 : index
    %c0_75 = arith.constant 0 : index
    %c0_76 = arith.constant 0 : index
    %135 = vector.load %arg6[%c0_73, %c10_74, %c0_75, %c0_76] : memref<1x32x4x128xf32, #tpu.memory_space<vmem>>, vector<1x1x4x128xf32>
    %136 = vector.shape_cast %135 : vector<1x1x4x128xf32> to vector<4x128xf32>
    %137 = vector.shape_cast %134 : vector<4x128xf32> to vector<1x1x4x128xf32>
    tpu.vector_store %arg6[%c0_73, %c10_74, %c0_75, %c0_76], %137 {strides = array<i32>} : memref<1x32x4x128xf32, #tpu.memory_space<vmem>>, vector<1x1x4x128xf32>,
    %c11 = arith.constant 11 : index
    %138 = memref.load %arg2[%c11] : memref<32xf32, #tpu.memory_space<smem>>
    %139 = vector.broadcast %138 : f32 to vector<4x128xf32>
    %140 = arith.mulf %131, %139 : vector<4x128xf32>
    %c0_77 = arith.constant 0 : index
    %c11_78 = arith.constant 11 : index
    %c0_79 = arith.constant 0 : index
    %c0_80 = arith.constant 0 : index
    %141 = vector.load %arg6[%c0_77, %c11_78, %c0_79, %c0_80] : memref<1x32x4x128xf32, #tpu.memory_space<vmem>>, vector<1x1x4x128xf32>
    %142 = vector.shape_cast %141 : vector<1x1x4x128xf32> to vector<4x128xf32>
    %143 = vector.shape_cast %140 : vector<4x128xf32> to vector<1x1x4x128xf32>
    tpu.vector_store %arg6[%c0_77, %c11_78, %c0_79, %c0_80], %143 {strides = array<i32>} : memref<1x32x4x128xf32, #tpu.memory_space<vmem>>, vector<1x1x4x128xf32>,
    %144 = vector.extract_strided_slice %115 {offsets = [2, 0, 0], sizes = [1, 4, 128], strides = [1, 1, 1]} : vector<4x4x128xf32> to vector<1x4x128xf32>
    %145 = vector.shape_cast %144 : vector<1x4x128xf32> to vector<4x128xf32>
    %c12 = arith.constant 12 : index
    %146 = memref.load %arg2[%c12] : memref<32xf32, #tpu.memory_space<smem>>
    %147 = vector.broadcast %146 : f32 to vector<4x128xf32>
    %148 = arith.mulf %145, %147 : vector<4x128xf32>
    %c0_81 = arith.constant 0 : index
    %c12_82 = arith.constant 12 : index
    %c0_83 = arith.constant 0 : index
    %c0_84 = arith.constant 0 : index
    %149 = vector.load %arg6[%c0_81, %c12_82, %c0_83, %c0_84] : memref<1x32x4x128xf32, #tpu.memory_space<vmem>>, vector<1x1x4x128xf32>
    %150 = vector.shape_cast %149 : vector<1x1x4x128xf32> to vector<4x128xf32>
    %151 = vector.shape_cast %148 : vector<4x128xf32> to vector<1x1x4x128xf32>
    tpu.vector_store %arg6[%c0_81, %c12_82, %c0_83, %c0_84], %151 {strides = array<i32>} : memref<1x32x4x128xf32, #tpu.memory_space<vmem>>, vector<1x1x4x128xf32>,
    %c13 = arith.constant 13 : index
    %152 = memref.load %arg2[%c13] : memref<32xf32, #tpu.memory_space<smem>>
    %153 = vector.broadcast %152 : f32 to vector<4x128xf32>
    %154 = arith.mulf %145, %153 : vector<4x128xf32>
    %c0_85 = arith.constant 0 : index
    %c13_86 = arith.constant 13 : index
    %c0_87 = arith.constant 0 : index
    %c0_88 = arith.constant 0 : index
    %155 = vector.load %arg6[%c0_85, %c13_86, %c0_87, %c0_88] : memref<1x32x4x128xf32, #tpu.memory_space<vmem>>, vector<1x1x4x128xf32>
    %156 = vector.shape_cast %155 : vector<1x1x4x128xf32> to vector<4x128xf32>
    %157 = vector.shape_cast %154 : vector<4x128xf32> to vector<1x1x4x128xf32>
    tpu.vector_store %arg6[%c0_85, %c13_86, %c0_87, %c0_88], %157 {strides = array<i32>} : memref<1x32x4x128xf32, #tpu.memory_space<vmem>>, vector<1x1x4x128xf32>,
    %158 = vector.extract_strided_slice %115 {offsets = [3, 0, 0], sizes = [1, 4, 128], strides = [1, 1, 1]} : vector<4x4x128xf32> to vector<1x4x128xf32>
    %159 = vector.shape_cast %158 : vector<1x4x128xf32> to vector<4x128xf32>
    %c14 = arith.constant 14 : index
    %160 = memref.load %arg2[%c14] : memref<32xf32, #tpu.memory_space<smem>>
    %161 = vector.broadcast %160 : f32 to vector<4x128xf32>
    %162 = arith.mulf %159, %161 : vector<4x128xf32>
    %c0_89 = arith.constant 0 : index
    %c14_90 = arith.constant 14 : index
    %c0_91 = arith.constant 0 : index
    %c0_92 = arith.constant 0 : index
    %163 = vector.load %arg6[%c0_89, %c14_90, %c0_91, %c0_92] : memref<1x32x4x128xf32, #tpu.memory_space<vmem>>, vector<1x1x4x128xf32>
    %164 = vector.shape_cast %163 : vector<1x1x4x128xf32> to vector<4x128xf32>
    %165 = vector.shape_cast %162 : vector<4x128xf32> to vector<1x1x4x128xf32>
    tpu.vector_store %arg6[%c0_89, %c14_90, %c0_91, %c0_92], %165 {strides = array<i32>} : memref<1x32x4x128xf32, #tpu.memory_space<vmem>>, vector<1x1x4x128xf32>,
    %c15 = arith.constant 15 : index
    %166 = memref.load %arg2[%c15] : memref<32xf32, #tpu.memory_space<smem>>
    %167 = vector.broadcast %166 : f32 to vector<4x128xf32>
    %168 = arith.mulf %159, %167 : vector<4x128xf32>
    %c0_93 = arith.constant 0 : index
    %c15_94 = arith.constant 15 : index
    %c0_95 = arith.constant 0 : index
    %c0_96 = arith.constant 0 : index
    %169 = vector.load %arg6[%c0_93, %c15_94, %c0_95, %c0_96] : memref<1x32x4x128xf32, #tpu.memory_space<vmem>>, vector<1x1x4x128xf32>
    %170 = vector.shape_cast %169 : vector<1x1x4x128xf32> to vector<4x128xf32>
    %171 = vector.shape_cast %168 : vector<4x128xf32> to vector<1x1x4x128xf32>
    tpu.vector_store %arg6[%c0_93, %c15_94, %c0_95, %c0_96], %171 {strides = array<i32>} : memref<1x32x4x128xf32, #tpu.memory_space<vmem>>, vector<1x1x4x128xf32>,
    %c0_97 = arith.constant 0 : index
    %c8_98 = arith.constant 8 : index
    %c0_99 = arith.constant 0 : index
    %c0_100 = arith.constant 0 : index
    %172 = vector.load %arg3[%c0_97, %c8_98, %c0_99, %c0_100] : memref<1x16x4x128xf32, #tpu.memory_space<vmem>>, vector<1x4x4x128xf32>
    %173 = vector.shape_cast %172 : vector<1x4x4x128xf32> to vector<4x4x128xf32>
    %cst_101 = arith.constant 0.353553385 : f32
    %174 = vector.broadcast %cst_101 : f32 to vector<4x4x128xf32>
    %175 = arith.mulf %173, %174 : vector<4x4x128xf32>
    %c0_102 = arith.constant 0 : index
    %c8_103 = arith.constant 8 : index
    %c0_104 = arith.constant 0 : index
    %c0_105 = arith.constant 0 : index
    %176 = vector.load %arg4[%c0_102, %c8_103, %c0_104, %c0_105] : memref<1x16x4x128xf32, #tpu.memory_space<vmem>>, vector<1x4x4x128xf32>
    %177 = vector.shape_cast %176 : vector<1x4x4x128xf32> to vector<4x4x128xf32>
    %c0_106 = arith.constant 0 : index
    %c8_107 = arith.constant 8 : index
    %c0_108 = arith.constant 0 : index
    %c0_109 = arith.constant 0 : index
    %178 = vector.load %arg5[%c0_106, %c8_107, %c0_108, %c0_109] : memref<1x16x4x128xf32, #tpu.memory_space<vmem>>, vector<1x4x4x128xf32>
    %179 = vector.shape_cast %178 : vector<1x4x4x128xf32> to vector<4x4x128xf32>
    %180 = vector.shape_cast %177 : vector<4x4x128xf32> to vector<4x4x1x128xf32>
    %181 = vector.shape_cast %175 : vector<4x4x128xf32> to vector<4x1x4x128xf32>
    %182 = vector.broadcast %180 : vector<4x4x1x128xf32> to vector<4x4x4x128xf32>
    %183 = vector.broadcast %181 : vector<4x1x4x128xf32> to vector<4x4x4x128xf32>
    %184 = arith.mulf %182, %183 : vector<4x4x4x128xf32>
    %cst_110 = arith.constant dense<0.000000e+00> : vector<4x4x128xf32>
    %185 = vector.multi_reduction <add>, %184, %cst_110 [0] : vector<4x4x4x128xf32> to vector<4x4x128xf32>
    %cst_111 = arith.constant dense<0xFF800000> : vector<4x128xf32>
    %186 = vector.multi_reduction <maximumf>, %185, %cst_111 [0] : vector<4x4x128xf32> to vector<4x128xf32>
    %187 = vector.shape_cast %186 : vector<4x128xf32> to vector<1x4x128xf32>
    %188 = vector.broadcast %187 : vector<1x4x128xf32> to vector<4x4x128xf32>
    %189 = arith.subf %185, %188 : vector<4x4x128xf32>
    %190 = math.exp %189 : vector<4x4x128xf32>
    %cst_112 = arith.constant dense<0.000000e+00> : vector<4x128xf32>
    %191 = vector.multi_reduction <add>, %190, %cst_112 [0] : vector<4x4x128xf32> to vector<4x128xf32>
    %192 = vector.shape_cast %190 : vector<4x4x128xf32> to vector<1x4x4x128xf32>
    %193 = vector.shape_cast %179 : vector<4x4x128xf32> to vector<4x4x1x128xf32>
    %194 = vector.broadcast %192 : vector<1x4x4x128xf32> to vector<4x4x4x128xf32>
    %195 = vector.broadcast %193 : vector<4x4x1x128xf32> to vector<4x4x4x128xf32>
    %196 = arith.mulf %194, %195 : vector<4x4x4x128xf32>
    %cst_113 = arith.constant dense<0.000000e+00> : vector<4x4x128xf32>
    %197 = vector.multi_reduction <add>, %196, %cst_113 [1] : vector<4x4x4x128xf32> to vector<4x4x128xf32>
    %198 = tpu.reciprocal %191 : vector<4x128xf32> -> vector<4x128xf32>
    %199 = vector.shape_cast %198 : vector<4x128xf32> to vector<1x4x128xf32>
    %200 = vector.broadcast %199 : vector<1x4x128xf32> to vector<4x4x128xf32>
    %201 = arith.mulf %197, %200 : vector<4x4x128xf32>
    %202 = vector.extract_strided_slice %201 {offsets = [0, 0, 0], sizes = [1, 4, 128], strides = [1, 1, 1]} : vector<4x4x128xf32> to vector<1x4x128xf32>
    %203 = vector.shape_cast %202 : vector<1x4x128xf32> to vector<4x128xf32>
    %c16 = arith.constant 16 : index
    %204 = memref.load %arg2[%c16] : memref<32xf32, #tpu.memory_space<smem>>
    %205 = vector.broadcast %204 : f32 to vector<4x128xf32>
    %206 = arith.mulf %203, %205 : vector<4x128xf32>
    %c0_114 = arith.constant 0 : index
    %c16_115 = arith.constant 16 : index
    %c0_116 = arith.constant 0 : index
    %c0_117 = arith.constant 0 : index
    %207 = vector.load %arg6[%c0_114, %c16_115, %c0_116, %c0_117] : memref<1x32x4x128xf32, #tpu.memory_space<vmem>>, vector<1x1x4x128xf32>
    %208 = vector.shape_cast %207 : vector<1x1x4x128xf32> to vector<4x128xf32>
    %209 = vector.shape_cast %206 : vector<4x128xf32> to vector<1x1x4x128xf32>
    tpu.vector_store %arg6[%c0_114, %c16_115, %c0_116, %c0_117], %209 {strides = array<i32>} : memref<1x32x4x128xf32, #tpu.memory_space<vmem>>, vector<1x1x4x128xf32>,
    %c17 = arith.constant 17 : index
    %210 = memref.load %arg2[%c17] : memref<32xf32, #tpu.memory_space<smem>>
    %211 = vector.broadcast %210 : f32 to vector<4x128xf32>
    %212 = arith.mulf %203, %211 : vector<4x128xf32>
    %c0_118 = arith.constant 0 : index
    %c17_119 = arith.constant 17 : index
    %c0_120 = arith.constant 0 : index
    %c0_121 = arith.constant 0 : index
    %213 = vector.load %arg6[%c0_118, %c17_119, %c0_120, %c0_121] : memref<1x32x4x128xf32, #tpu.memory_space<vmem>>, vector<1x1x4x128xf32>
    %214 = vector.shape_cast %213 : vector<1x1x4x128xf32> to vector<4x128xf32>
    %215 = vector.shape_cast %212 : vector<4x128xf32> to vector<1x1x4x128xf32>
    tpu.vector_store %arg6[%c0_118, %c17_119, %c0_120, %c0_121], %215 {strides = array<i32>} : memref<1x32x4x128xf32, #tpu.memory_space<vmem>>, vector<1x1x4x128xf32>,
    %216 = vector.extract_strided_slice %201 {offsets = [1, 0, 0], sizes = [1, 4, 128], strides = [1, 1, 1]} : vector<4x4x128xf32> to vector<1x4x128xf32>
    %217 = vector.shape_cast %216 : vector<1x4x128xf32> to vector<4x128xf32>
    %c18 = arith.constant 18 : index
    %218 = memref.load %arg2[%c18] : memref<32xf32, #tpu.memory_space<smem>>
    %219 = vector.broadcast %218 : f32 to vector<4x128xf32>
    %220 = arith.mulf %217, %219 : vector<4x128xf32>
    %c0_122 = arith.constant 0 : index
    %c18_123 = arith.constant 18 : index
    %c0_124 = arith.constant 0 : index
    %c0_125 = arith.constant 0 : index
    %221 = vector.load %arg6[%c0_122, %c18_123, %c0_124, %c0_125] : memref<1x32x4x128xf32, #tpu.memory_space<vmem>>, vector<1x1x4x128xf32>
    %222 = vector.shape_cast %221 : vector<1x1x4x128xf32> to vector<4x128xf32>
    %223 = vector.shape_cast %220 : vector<4x128xf32> to vector<1x1x4x128xf32>
    tpu.vector_store %arg6[%c0_122, %c18_123, %c0_124, %c0_125], %223 {strides = array<i32>} : memref<1x32x4x128xf32, #tpu.memory_space<vmem>>, vector<1x1x4x128xf32>,
    %c19 = arith.constant 19 : index
    %224 = memref.load %arg2[%c19] : memref<32xf32, #tpu.memory_space<smem>>
    %225 = vector.broadcast %224 : f32 to vector<4x128xf32>
    %226 = arith.mulf %217, %225 : vector<4x128xf32>
    %c0_126 = arith.constant 0 : index
    %c19_127 = arith.constant 19 : index
    %c0_128 = arith.constant 0 : index
    %c0_129 = arith.constant 0 : index
    %227 = vector.load %arg6[%c0_126, %c19_127, %c0_128, %c0_129] : memref<1x32x4x128xf32, #tpu.memory_space<vmem>>, vector<1x1x4x128xf32>
    %228 = vector.shape_cast %227 : vector<1x1x4x128xf32> to vector<4x128xf32>
    %229 = vector.shape_cast %226 : vector<4x128xf32> to vector<1x1x4x128xf32>
    tpu.vector_store %arg6[%c0_126, %c19_127, %c0_128, %c0_129], %229 {strides = array<i32>} : memref<1x32x4x128xf32, #tpu.memory_space<vmem>>, vector<1x1x4x128xf32>,
    %230 = vector.extract_strided_slice %201 {offsets = [2, 0, 0], sizes = [1, 4, 128], strides = [1, 1, 1]} : vector<4x4x128xf32> to vector<1x4x128xf32>
    %231 = vector.shape_cast %230 : vector<1x4x128xf32> to vector<4x128xf32>
    %c20 = arith.constant 20 : index
    %232 = memref.load %arg2[%c20] : memref<32xf32, #tpu.memory_space<smem>>
    %233 = vector.broadcast %232 : f32 to vector<4x128xf32>
    %234 = arith.mulf %231, %233 : vector<4x128xf32>
    %c0_130 = arith.constant 0 : index
    %c20_131 = arith.constant 20 : index
    %c0_132 = arith.constant 0 : index
    %c0_133 = arith.constant 0 : index
    %235 = vector.load %arg6[%c0_130, %c20_131, %c0_132, %c0_133] : memref<1x32x4x128xf32, #tpu.memory_space<vmem>>, vector<1x1x4x128xf32>
    %236 = vector.shape_cast %235 : vector<1x1x4x128xf32> to vector<4x128xf32>
    %237 = vector.shape_cast %234 : vector<4x128xf32> to vector<1x1x4x128xf32>
    tpu.vector_store %arg6[%c0_130, %c20_131, %c0_132, %c0_133], %237 {strides = array<i32>} : memref<1x32x4x128xf32, #tpu.memory_space<vmem>>, vector<1x1x4x128xf32>,
    %c21 = arith.constant 21 : index
    %238 = memref.load %arg2[%c21] : memref<32xf32, #tpu.memory_space<smem>>
    %239 = vector.broadcast %238 : f32 to vector<4x128xf32>
    %240 = arith.mulf %231, %239 : vector<4x128xf32>
    %c0_134 = arith.constant 0 : index
    %c21_135 = arith.constant 21 : index
    %c0_136 = arith.constant 0 : index
    %c0_137 = arith.constant 0 : index
    %241 = vector.load %arg6[%c0_134, %c21_135, %c0_136, %c0_137] : memref<1x32x4x128xf32, #tpu.memory_space<vmem>>, vector<1x1x4x128xf32>
    %242 = vector.shape_cast %241 : vector<1x1x4x128xf32> to vector<4x128xf32>
    %243 = vector.shape_cast %240 : vector<4x128xf32> to vector<1x1x4x128xf32>
    tpu.vector_store %arg6[%c0_134, %c21_135, %c0_136, %c0_137], %243 {strides = array<i32>} : memref<1x32x4x128xf32, #tpu.memory_space<vmem>>, vector<1x1x4x128xf32>,
    %244 = vector.extract_strided_slice %201 {offsets = [3, 0, 0], sizes = [1, 4, 128], strides = [1, 1, 1]} : vector<4x4x128xf32> to vector<1x4x128xf32>
    %245 = vector.shape_cast %244 : vector<1x4x128xf32> to vector<4x128xf32>
    %c22 = arith.constant 22 : index
    %246 = memref.load %arg2[%c22] : memref<32xf32, #tpu.memory_space<smem>>
    %247 = vector.broadcast %246 : f32 to vector<4x128xf32>
    %248 = arith.mulf %245, %247 : vector<4x128xf32>
    %c0_138 = arith.constant 0 : index
    %c22_139 = arith.constant 22 : index
    %c0_140 = arith.constant 0 : index
    %c0_141 = arith.constant 0 : index
    %249 = vector.load %arg6[%c0_138, %c22_139, %c0_140, %c0_141] : memref<1x32x4x128xf32, #tpu.memory_space<vmem>>, vector<1x1x4x128xf32>
    %250 = vector.shape_cast %249 : vector<1x1x4x128xf32> to vector<4x128xf32>
    %251 = vector.shape_cast %248 : vector<4x128xf32> to vector<1x1x4x128xf32>
    tpu.vector_store %arg6[%c0_138, %c22_139, %c0_140, %c0_141], %251 {strides = array<i32>} : memref<1x32x4x128xf32, #tpu.memory_space<vmem>>, vector<1x1x4x128xf32>,
    %c23 = arith.constant 23 : index
    %252 = memref.load %arg2[%c23] : memref<32xf32, #tpu.memory_space<smem>>
    %253 = vector.broadcast %252 : f32 to vector<4x128xf32>
    %254 = arith.mulf %245, %253 : vector<4x128xf32>
    %c0_142 = arith.constant 0 : index
    %c23_143 = arith.constant 23 : index
    %c0_144 = arith.constant 0 : index
    %c0_145 = arith.constant 0 : index
    %255 = vector.load %arg6[%c0_142, %c23_143, %c0_144, %c0_145] : memref<1x32x4x128xf32, #tpu.memory_space<vmem>>, vector<1x1x4x128xf32>
    %256 = vector.shape_cast %255 : vector<1x1x4x128xf32> to vector<4x128xf32>
    %257 = vector.shape_cast %254 : vector<4x128xf32> to vector<1x1x4x128xf32>
    tpu.vector_store %arg6[%c0_142, %c23_143, %c0_144, %c0_145], %257 {strides = array<i32>} : memref<1x32x4x128xf32, #tpu.memory_space<vmem>>, vector<1x1x4x128xf32>,
    %c0_146 = arith.constant 0 : index
    %c12_147 = arith.constant 12 : index
    %c0_148 = arith.constant 0 : index
    %c0_149 = arith.constant 0 : index
    %258 = vector.load %arg3[%c0_146, %c12_147, %c0_148, %c0_149] : memref<1x16x4x128xf32, #tpu.memory_space<vmem>>, vector<1x4x4x128xf32>
    %259 = vector.shape_cast %258 : vector<1x4x4x128xf32> to vector<4x4x128xf32>
    %cst_150 = arith.constant 0.353553385 : f32
    %260 = vector.broadcast %cst_150 : f32 to vector<4x4x128xf32>
    %261 = arith.mulf %259, %260 : vector<4x4x128xf32>
    %c0_151 = arith.constant 0 : index
    %c12_152 = arith.constant 12 : index
    %c0_153 = arith.constant 0 : index
    %c0_154 = arith.constant 0 : index
    %262 = vector.load %arg4[%c0_151, %c12_152, %c0_153, %c0_154] : memref<1x16x4x128xf32, #tpu.memory_space<vmem>>, vector<1x4x4x128xf32>
    %263 = vector.shape_cast %262 : vector<1x4x4x128xf32> to vector<4x4x128xf32>
    %c0_155 = arith.constant 0 : index
    %c12_156 = arith.constant 12 : index
    %c0_157 = arith.constant 0 : index
    %c0_158 = arith.constant 0 : index
    %264 = vector.load %arg5[%c0_155, %c12_156, %c0_157, %c0_158] : memref<1x16x4x128xf32, #tpu.memory_space<vmem>>, vector<1x4x4x128xf32>
    %265 = vector.shape_cast %264 : vector<1x4x4x128xf32> to vector<4x4x128xf32>
    %266 = vector.shape_cast %263 : vector<4x4x128xf32> to vector<4x4x1x128xf32>
    %267 = vector.shape_cast %261 : vector<4x4x128xf32> to vector<4x1x4x128xf32>
    %268 = vector.broadcast %266 : vector<4x4x1x128xf32> to vector<4x4x4x128xf32>
    %269 = vector.broadcast %267 : vector<4x1x4x128xf32> to vector<4x4x4x128xf32>
    %270 = arith.mulf %268, %269 : vector<4x4x4x128xf32>
    %cst_159 = arith.constant dense<0.000000e+00> : vector<4x4x128xf32>
    %271 = vector.multi_reduction <add>, %270, %cst_159 [0] : vector<4x4x4x128xf32> to vector<4x4x128xf32>
    %cst_160 = arith.constant dense<0xFF800000> : vector<4x128xf32>
    %272 = vector.multi_reduction <maximumf>, %271, %cst_160 [0] : vector<4x4x128xf32> to vector<4x128xf32>
    %273 = vector.shape_cast %272 : vector<4x128xf32> to vector<1x4x128xf32>
    %274 = vector.broadcast %273 : vector<1x4x128xf32> to vector<4x4x128xf32>
    %275 = arith.subf %271, %274 : vector<4x4x128xf32>
    %276 = math.exp %275 : vector<4x4x128xf32>
    %cst_161 = arith.constant dense<0.000000e+00> : vector<4x128xf32>
    %277 = vector.multi_reduction <add>, %276, %cst_161 [0] : vector<4x4x128xf32> to vector<4x128xf32>
    %278 = vector.shape_cast %276 : vector<4x4x128xf32> to vector<1x4x4x128xf32>
    %279 = vector.shape_cast %265 : vector<4x4x128xf32> to vector<4x4x1x128xf32>
    %280 = vector.broadcast %278 : vector<1x4x4x128xf32> to vector<4x4x4x128xf32>
    %281 = vector.broadcast %279 : vector<4x4x1x128xf32> to vector<4x4x4x128xf32>
    %282 = arith.mulf %280, %281 : vector<4x4x4x128xf32>
    %cst_162 = arith.constant dense<0.000000e+00> : vector<4x4x128xf32>
    %283 = vector.multi_reduction <add>, %282, %cst_162 [1] : vector<4x4x4x128xf32> to vector<4x4x128xf32>
    %284 = tpu.reciprocal %277 : vector<4x128xf32> -> vector<4x128xf32>
    %285 = vector.shape_cast %284 : vector<4x128xf32> to vector<1x4x128xf32>
    %286 = vector.broadcast %285 : vector<1x4x128xf32> to vector<4x4x128xf32>
    %287 = arith.mulf %283, %286 : vector<4x4x128xf32>
    %288 = vector.extract_strided_slice %287 {offsets = [0, 0, 0], sizes = [1, 4, 128], strides = [1, 1, 1]} : vector<4x4x128xf32> to vector<1x4x128xf32>
    %289 = vector.shape_cast %288 : vector<1x4x128xf32> to vector<4x128xf32>
    %c24 = arith.constant 24 : index
    %290 = memref.load %arg2[%c24] : memref<32xf32, #tpu.memory_space<smem>>
    %291 = vector.broadcast %290 : f32 to vector<4x128xf32>
    %292 = arith.mulf %289, %291 : vector<4x128xf32>
    %c0_163 = arith.constant 0 : index
    %c24_164 = arith.constant 24 : index
    %c0_165 = arith.constant 0 : index
    %c0_166 = arith.constant 0 : index
    %293 = vector.load %arg6[%c0_163, %c24_164, %c0_165, %c0_166] : memref<1x32x4x128xf32, #tpu.memory_space<vmem>>, vector<1x1x4x128xf32>
    %294 = vector.shape_cast %293 : vector<1x1x4x128xf32> to vector<4x128xf32>
    %295 = vector.shape_cast %292 : vector<4x128xf32> to vector<1x1x4x128xf32>
    tpu.vector_store %arg6[%c0_163, %c24_164, %c0_165, %c0_166], %295 {strides = array<i32>} : memref<1x32x4x128xf32, #tpu.memory_space<vmem>>, vector<1x1x4x128xf32>,
    %c25 = arith.constant 25 : index
    %296 = memref.load %arg2[%c25] : memref<32xf32, #tpu.memory_space<smem>>
    %297 = vector.broadcast %296 : f32 to vector<4x128xf32>
    %298 = arith.mulf %289, %297 : vector<4x128xf32>
    %c0_167 = arith.constant 0 : index
    %c25_168 = arith.constant 25 : index
    %c0_169 = arith.constant 0 : index
    %c0_170 = arith.constant 0 : index
    %299 = vector.load %arg6[%c0_167, %c25_168, %c0_169, %c0_170] : memref<1x32x4x128xf32, #tpu.memory_space<vmem>>, vector<1x1x4x128xf32>
    %300 = vector.shape_cast %299 : vector<1x1x4x128xf32> to vector<4x128xf32>
    %301 = vector.shape_cast %298 : vector<4x128xf32> to vector<1x1x4x128xf32>
    tpu.vector_store %arg6[%c0_167, %c25_168, %c0_169, %c0_170], %301 {strides = array<i32>} : memref<1x32x4x128xf32, #tpu.memory_space<vmem>>, vector<1x1x4x128xf32>,
    %302 = vector.extract_strided_slice %287 {offsets = [1, 0, 0], sizes = [1, 4, 128], strides = [1, 1, 1]} : vector<4x4x128xf32> to vector<1x4x128xf32>
    %303 = vector.shape_cast %302 : vector<1x4x128xf32> to vector<4x128xf32>
    %c26 = arith.constant 26 : index
    %304 = memref.load %arg2[%c26] : memref<32xf32, #tpu.memory_space<smem>>
    %305 = vector.broadcast %304 : f32 to vector<4x128xf32>
    %306 = arith.mulf %303, %305 : vector<4x128xf32>
    %c0_171 = arith.constant 0 : index
    %c26_172 = arith.constant 26 : index
    %c0_173 = arith.constant 0 : index
    %c0_174 = arith.constant 0 : index
    %307 = vector.load %arg6[%c0_171, %c26_172, %c0_173, %c0_174] : memref<1x32x4x128xf32, #tpu.memory_space<vmem>>, vector<1x1x4x128xf32>
    %308 = vector.shape_cast %307 : vector<1x1x4x128xf32> to vector<4x128xf32>
    %309 = vector.shape_cast %306 : vector<4x128xf32> to vector<1x1x4x128xf32>
    tpu.vector_store %arg6[%c0_171, %c26_172, %c0_173, %c0_174], %309 {strides = array<i32>} : memref<1x32x4x128xf32, #tpu.memory_space<vmem>>, vector<1x1x4x128xf32>,
    %c27 = arith.constant 27 : index
    %310 = memref.load %arg2[%c27] : memref<32xf32, #tpu.memory_space<smem>>
    %311 = vector.broadcast %310 : f32 to vector<4x128xf32>
    %312 = arith.mulf %303, %311 : vector<4x128xf32>
    %c0_175 = arith.constant 0 : index
    %c27_176 = arith.constant 27 : index
    %c0_177 = arith.constant 0 : index
    %c0_178 = arith.constant 0 : index
    %313 = vector.load %arg6[%c0_175, %c27_176, %c0_177, %c0_178] : memref<1x32x4x128xf32, #tpu.memory_space<vmem>>, vector<1x1x4x128xf32>
    %314 = vector.shape_cast %313 : vector<1x1x4x128xf32> to vector<4x128xf32>
    %315 = vector.shape_cast %312 : vector<4x128xf32> to vector<1x1x4x128xf32>
    tpu.vector_store %arg6[%c0_175, %c27_176, %c0_177, %c0_178], %315 {strides = array<i32>} : memref<1x32x4x128xf32, #tpu.memory_space<vmem>>, vector<1x1x4x128xf32>,
    %316 = vector.extract_strided_slice %287 {offsets = [2, 0, 0], sizes = [1, 4, 128], strides = [1, 1, 1]} : vector<4x4x128xf32> to vector<1x4x128xf32>
    %317 = vector.shape_cast %316 : vector<1x4x128xf32> to vector<4x128xf32>
    %c28 = arith.constant 28 : index
    %318 = memref.load %arg2[%c28] : memref<32xf32, #tpu.memory_space<smem>>
    %319 = vector.broadcast %318 : f32 to vector<4x128xf32>
    %320 = arith.mulf %317, %319 : vector<4x128xf32>
    %c0_179 = arith.constant 0 : index
    %c28_180 = arith.constant 28 : index
    %c0_181 = arith.constant 0 : index
    %c0_182 = arith.constant 0 : index
    %321 = vector.load %arg6[%c0_179, %c28_180, %c0_181, %c0_182] : memref<1x32x4x128xf32, #tpu.memory_space<vmem>>, vector<1x1x4x128xf32>
    %322 = vector.shape_cast %321 : vector<1x1x4x128xf32> to vector<4x128xf32>
    %323 = vector.shape_cast %320 : vector<4x128xf32> to vector<1x1x4x128xf32>
    tpu.vector_store %arg6[%c0_179, %c28_180, %c0_181, %c0_182], %323 {strides = array<i32>} : memref<1x32x4x128xf32, #tpu.memory_space<vmem>>, vector<1x1x4x128xf32>,
    %c29 = arith.constant 29 : index
    %324 = memref.load %arg2[%c29] : memref<32xf32, #tpu.memory_space<smem>>
    %325 = vector.broadcast %324 : f32 to vector<4x128xf32>
    %326 = arith.mulf %317, %325 : vector<4x128xf32>
    %c0_183 = arith.constant 0 : index
    %c29_184 = arith.constant 29 : index
    %c0_185 = arith.constant 0 : index
    %c0_186 = arith.constant 0 : index
    %327 = vector.load %arg6[%c0_183, %c29_184, %c0_185, %c0_186] : memref<1x32x4x128xf32, #tpu.memory_space<vmem>>, vector<1x1x4x128xf32>
    %328 = vector.shape_cast %327 : vector<1x1x4x128xf32> to vector<4x128xf32>
    %329 = vector.shape_cast %326 : vector<4x128xf32> to vector<1x1x4x128xf32>
    tpu.vector_store %arg6[%c0_183, %c29_184, %c0_185, %c0_186], %329 {strides = array<i32>} : memref<1x32x4x128xf32, #tpu.memory_space<vmem>>, vector<1x1x4x128xf32>,
    %330 = vector.extract_strided_slice %287 {offsets = [3, 0, 0], sizes = [1, 4, 128], strides = [1, 1, 1]} : vector<4x4x128xf32> to vector<1x4x128xf32>
    %331 = vector.shape_cast %330 : vector<1x4x128xf32> to vector<4x128xf32>
    %c30 = arith.constant 30 : index
    %332 = memref.load %arg2[%c30] : memref<32xf32, #tpu.memory_space<smem>>
    %333 = vector.broadcast %332 : f32 to vector<4x128xf32>
    %334 = arith.mulf %331, %333 : vector<4x128xf32>
    %c0_187 = arith.constant 0 : index
    %c30_188 = arith.constant 30 : index
    %c0_189 = arith.constant 0 : index
    %c0_190 = arith.constant 0 : index
    %335 = vector.load %arg6[%c0_187, %c30_188, %c0_189, %c0_190] : memref<1x32x4x128xf32, #tpu.memory_space<vmem>>, vector<1x1x4x128xf32>
    %336 = vector.shape_cast %335 : vector<1x1x4x128xf32> to vector<4x128xf32>
    %337 = vector.shape_cast %334 : vector<4x128xf32> to vector<1x1x4x128xf32>
    tpu.vector_store %arg6[%c0_187, %c30_188, %c0_189, %c0_190], %337 {strides = array<i32>} : memref<1x32x4x128xf32, #tpu.memory_space<vmem>>, vector<1x1x4x128xf32>,
    %c31 = arith.constant 31 : index
    %338 = memref.load %arg2[%c31] : memref<32xf32, #tpu.memory_space<smem>>
    %339 = vector.broadcast %338 : f32 to vector<4x128xf32>
    %340 = arith.mulf %331, %339 : vector<4x128xf32>
    %c0_191 = arith.constant 0 : index
    %c31_192 = arith.constant 31 : index
    %c0_193 = arith.constant 0 : index
    %c0_194 = arith.constant 0 : index
    %341 = vector.load %arg6[%c0_191, %c31_192, %c0_193, %c0_194] : memref<1x32x4x128xf32, #tpu.memory_space<vmem>>, vector<1x1x4x128xf32>
    %342 = vector.shape_cast %341 : vector<1x1x4x128xf32> to vector<4x128xf32>
    %343 = vector.shape_cast %340 : vector<4x128xf32> to vector<1x1x4x128xf32>
    tpu.vector_store %arg6[%c0_191, %c31_192, %c0_193, %c0_194], %343 {strides = array<i32>} : memref<1x32x4x128xf32, #tpu.memory_space<vmem>>, vector<1x1x4x128xf32>,
    return
  }
  func.func @transform_0(%arg0: i32, %arg1: i32) -> i32 {
    %c0_i32 = arith.constant 0 : i32
    %c0_i32_0 = arith.constant 0 : i32
    return %c0_i32 : i32
  }
  func.func @transform_1(%arg0: i32, %arg1: i32) -> (i32, i32, i32, i32) {
    %c0_i32 = arith.constant 0 : i32
    %c0_i32_0 = arith.constant 0 : i32
    %c0_i32_1 = arith.constant 0 : i32
    return %arg0, %c0_i32, %c0_i32_0, %arg1 : i32, i32, i32, i32
  }
  func.func @transform_2(%arg0: i32, %arg1: i32) -> (i32, i32, i32, i32) {
    %c0_i32 = arith.constant 0 : i32
    %c0_i32_0 = arith.constant 0 : i32
    %c0_i32_1 = arith.constant 0 : i32
    return %arg0, %c0_i32, %c0_i32_0, %arg1 : i32, i32, i32, i32
  }
  func.func @transform_3(%arg0: i32, %arg1: i32) -> (i32, i32, i32, i32) {
    %c0_i32 = arith.constant 0 : i32
    %c0_i32_0 = arith.constant 0 : i32
    %c0_i32_1 = arith.constant 0 : i32
    return %arg0, %c0_i32, %c0_i32_0, %arg1 : i32, i32, i32, i32
  }
  func.func @transform_4(%arg0: i32, %arg1: i32) -> (i32, i32, i32, i32) {
    %c0_i32 = arith.constant 0 : i32
    %c0_i32_0 = arith.constant 0 : i32
    %c0_i32_1 = arith.constant 0 : i32
    return %arg0, %c0_i32, %c0_i32_0, %arg1 : i32, i32, i32, i32
  }
}

</mosaic_0001>

<llo_original>
// kernel: tca_forward.1
$region0: #{tca_forward.1}
  #allocation0 [shape = 'u32[]', space=smem, size = 0x4, offset = 0x4, fixed_abs, tag = 'smem constant byte address 0x4 - core index']
  #allocation1 [shape = 'u32[144,128]{1,0:T(1,128)}', space=vmem, size = 0x12000, scoped, tag = 'internal scratch']
  %s0 = inlined_call_operand.vmem [shape: f32[32], index: 0, kind: input, shape index: {}]
  %s1 = inlined_call_operand.vmem [shape: f32[2,16,4,128], index: 1, kind: input, shape index: {}]
  %s2 = inlined_call_operand.vmem [shape: f32[2,16,4,128], index: 2, kind: input, shape index: {}]
  %s3 = inlined_call_operand.vmem [shape: f32[2,16,4,128], index: 3, kind: input, shape index: {}]
  %s4 = inlined_call_operand.vmem [shape: f32[2,32,4,128], index: 4, kind: output, shape index: {}]
  %s5 = sld [smem:[#allocation0]]
  $region53: #{tca_forward.1} parent=0
    _
  %s7 = ssub.s32 1, %s5
  %s8 = scalar_select 0, %s7, %s5
  $region1: #{tca_forward.1} parent=0
    #allocation2 [shape = 'u8[512]{0}', space=smem, size = 0x200, scoped, tag = 'input window, operand 0, single buffered']
    #allocation3 [shape = 's32[2]{0}', space=sflag, size = 0x8, scoped, tag = 'scoped memory for tca_forward.1']
    %9 = vsyncpa [#allocation3], 0
    loop: start=0, step=1, limit=4
    $region2: #{tca_forward.1} parent=1 // loop_pre_header
      _
    $region3: #{tca_forward.1} parent=1 // loop_header
      %s11 = sphi 0, %s15
      %p12 = scmp.ge.s32.totalorder %s11, 4
      %s18 = sphi 0, %s30
      %s19 = sphi 0, %s26
      %s20 = sphi 0, %s18
      %s21 = sphi 0, %s19
      %s22 = sphi 0, %s20
      %s23 = sphi 0, %s21
      %s31 = sphi 0, %s31
      %s33 = sphi 0, %s31
      %s34 = sphi 0, %s33
      %s48 = sphi 0, %s34
      %s56 = sphi 0, %s58
      %s59 = sphi 0, %s56
      %s60 = sphi 0, %s59
      %s76 = sphi 0, %s60
      %s84 = sphi 0, %s86
      %s87 = sphi 0, %s84
      %s88 = sphi 0, %s87
      %s104 = sphi 0, %s88
      %s112 = sphi 0, %s114
      %s115 = sphi 0, %s112
      %s116 = sphi 0, %s115
      %s132 = sphi 0, %s116
      %s140 = sphi 0, %s142
      %s143 = sphi 0, %s140
      %s144 = sphi 0, %s143
      %s160 = sphi 0, %s144
    $region4: #{tca_forward.1} parent=1 // loop_header_branch
      %14 = sbr.rel (%p12) target = $region8
    $region5: #{tca_forward.1} parent=1 // loop_body
      %s16 = ssub.s32 %s11, 1
      %s17 = ssub.s32 %s11, 2
      %s24 = sadd.s32 1, %s19
      %p25 = scmp.ge.s32.totalorder %s24, 1
      %s26 = scalar_select %p25, 0, %s24
      %s27 = sadd.s32 1, %s18
      %s28 = scalar_select %p25, %s27, %s18
      %p29 = scmp.ge.s32.totalorder %s28, 2
      %s30 = scalar_select %p29, 0, %s28
      %s32 = sadd.s32 %s31, 1
      %p35 = scmp.eq.s32.totalorder %s11, 1
      %p36 = scmp.ne.s32.totalorder %s31, %s33
      %p37 = scmp.eq.s32.totalorder %s11, 0
      %p38 = por %p36, %p37
      %p39 = scmp.ne.s32.totalorder %s31, %s33
      %p40 = scmp.eq.s32.totalorder %s16, 1
      %p41 = por %p39, %p40
      %p42 = scmp.ne.s32.totalorder %s33, %s34
      %p43 = scmp.eq.s32.totalorder %s16, 0
      %p44 = por %p42, %p43
      %p45 = scmp.ne.s32.totalorder %s33, %s34
      %p46 = scmp.eq.s32.totalorder %s17, 1
      %p47 = por %p45, %p46
      %p49 = scmp.ne.s32.totalorder %s34, %s48
      %p50 = scmp.eq.s32.totalorder %s17, 0
      %p51 = por %p49, %p50
      %s52 = ssub.s32 %s18, %s30
      %s53 = ssub.s32 %s19, %s26
      %s54 = sor.u32 %s52, %s53
      %p55 = scmp.eq.s32.totalorder %s54, 0
      %s57 = sadd.s32 %s56, 1
      %s58 = scalar_select %p55, %s56, %s57
      %p61 = pneg %p55
      %p62 = scmp.eq.s32.totalorder %s11, 1
      %p63 = por %p61, %p62
      %p64 = scmp.ne.s32.totalorder %s56, %s59
      %p65 = scmp.eq.s32.totalorder %s11, 0
      %p66 = por %p64, %p65
      %p67 = scmp.ne.s32.totalorder %s56, %s59
      %p68 = scmp.eq.s32.totalorder %s16, 1
      %p69 = por %p67, %p68
      %p70 = scmp.ne.s32.totalorder %s59, %s60
      %p71 = scmp.eq.s32.totalorder %s16, 0
      %p72 = por %p70, %p71
      %p73 = scmp.ne.s32.totalorder %s59, %s60
      %p74 = scmp.eq.s32.totalorder %s17, 1
      %p75 = por %p73, %p74
      %p77 = scmp.ne.s32.totalorder %s60, %s76
      %p78 = scmp.eq.s32.totalorder %s17, 0
      %p79 = por %p77, %p78
      %s80 = ssub.s32 %s18, %s30
      %s81 = ssub.s32 %s19, %s26
      %s82 = sor.u32 %s80, %s81
      %p83 = scmp.eq.s32.totalorder %s82, 0
      %s85 = sadd.s32 %s84, 1
      %s86 = scalar_select %p83, %s84, %s85
      %p89 = pneg %p83
      %p90 = scmp.eq.s32.totalorder %s11, 1
      %p91 = por %p89, %p90
      %p92 = scmp.ne.s32.totalorder %s84, %s87
      %p93 = scmp.eq.s32.totalorder %s11, 0
      %p94 = por %p92, %p93
      %p95 = scmp.ne.s32.totalorder %s84, %s87
      %p96 = scmp.eq.s32.totalorder %s16, 1
      %p97 = por %p95, %p96
      %p98 = scmp.ne.s32.totalorder %s87, %s88
      %p99 = scmp.eq.s32.totalorder %s16, 0
      %p100 = por %p98, %p99
      %p101 = scmp.ne.s32.totalorder %s87, %s88
      %p102 = scmp.eq.s32.totalorder %s17, 1
      %p103 = por %p101, %p102
      %p105 = scmp.ne.s32.totalorder %s88, %s104
      %p106 = scmp.eq.s32.totalorder %s17, 0
      %p107 = por %p105, %p106
      %s108 = ssub.s32 %s18, %s30
      %s109 = ssub.s32 %s19, %s26
      %s110 = sor.u32 %s108, %s109
      %p111 = scmp.eq.s32.totalorder %s110, 0
      %s113 = sadd.s32 %s112, 1
      %s114 = scalar_select %p111, %s112, %s113
      %p117 = pneg %p111
      %p118 = scmp.eq.s32.totalorder %s11, 1
      %p119 = por %p117, %p118
      %p120 = scmp.ne.s32.totalorder %s112, %s115
      %p121 = scmp.eq.s32.totalorder %s11, 0
      %p122 = por %p120, %p121
      %p123 = scmp.ne.s32.totalorder %s112, %s115
      %p124 = scmp.eq.s32.totalorder %s16, 1
      %p125 = por %p123, %p124
      %p126 = scmp.ne.s32.totalorder %s115, %s116
      %p127 = scmp.eq.s32.totalorder %s16, 0
      %p128 = por %p126, %p127
      %p129 = scmp.ne.s32.totalorder %s115, %s116
      %p130 = scmp.eq.s32.totalorder %s17, 1
      %p131 = por %p129, %p130
      %p133 = scmp.ne.s32.totalorder %s116, %s132
      %p134 = scmp.eq.s32.totalorder %s17, 0
      %p135 = por %p133, %p134
      %s136 = ssub.s32 %s18, %s30
      %s137 = ssub.s32 %s19, %s26
      %s138 = sor.u32 %s136, %s137
      %p139 = scmp.eq.s32.totalorder %s138, 0
      %s141 = sadd.s32 %s140, 1
      %s142 = scalar_select %p139, %s140, %s141
      %p145 = pneg %p139
      %p146 = scmp.eq.s32.totalorder %s11, 1
      %p147 = por %p145, %p146
      %p148 = scmp.ne.s32.totalorder %s140, %s143
      %p149 = scmp.eq.s32.totalorder %s11, 0
      %p150 = por %p148, %p149
      %p151 = scmp.ne.s32.totalorder %s140, %s143
      %p152 = scmp.eq.s32.totalorder %s16, 1
      %p153 = por %p151, %p152
      %p154 = scmp.ne.s32.totalorder %s143, %s144
      %p155 = scmp.eq.s32.totalorder %s16, 0
      %p156 = por %p154, %p155
      %p157 = scmp.ne.s32.totalorder %s143, %s144
      %p158 = scmp.eq.s32.totalorder %s17, 1
      %p159 = por %p157, %p158
      %p161 = scmp.ne.s32.totalorder %s144, %s160
      %p162 = scmp.eq.s32.totalorder %s17, 0
      %p163 = por %p161, %p162
      %p164 = scmp.le.s32.totalorder 1, %s11
      %p165 = scmp.lt.s32.totalorder %s11, 3
      %p166 = pnand %p164, %p165
      %p167 = pneg %p166
      // Predicated region
      $region9: #{tca_forward.1} parent=5 // pred_check
        _
      $region10: #{tca_forward.1} parent=5 // pred_check_branch
        %169 = sbr.rel (%p166) target = $region12
      $region11: #{tca_forward.1} parent=5 // pred_region
        %s170 = ssub.s32 %s11, 1
        // Predicated region
        $region13: #{tca_forward.1} parent=11 // pred_check
          %p171 = pneg %p44
        $region14: #{tca_forward.1} parent=11 // pred_check_branch
          %173 = sbr.rel (%p171) target = $region16
        $region15: #{tca_forward.1} parent=11 // pred_region
          %s175 = ssub.s32 16, 16
          %176 = vsyncadd [#allocation3], %s175
          %s178 = sshll.u32 %s0, 4
          %s179 = int_to_ptr.vmem [resolvable:$true] %s178
          %181 = dma.vmem_to_smem %s179, 16, [#allocation2], [#allocation3]
        $region16: #{tca_forward.1} parent=11 // pred_fallthru
          _
      $region12: #{tca_forward.1} parent=5 // pred_fallthru
        _
      %p182 = scmp.lt.s32.totalorder %s11, 2
      // Predicated region
      $region17: #{tca_forward.1} parent=5 // pred_check
        %p183 = pneg %p182
      $region18: #{tca_forward.1} parent=5 // pred_check_branch
        %185 = sbr.rel (%p183) target = $region20
      $region19: #{tca_forward.1} parent=5 // pred_region
        // Predicated region
        $region21: #{tca_forward.1} parent=19 // pred_check
          %p186 = pneg %p66
        $region22: #{tca_forward.1} parent=19 // pred_check_branch
          %188 = sbr.rel (%p186) target = $region24
        $region23: #{tca_forward.1} parent=19 // pred_region
          %p189 = scmp.lt.s32.totalorder %s18, 1
          %s190 = scalar_select %p189, %s18, 1
          %p191 = scmp.lt.s32.totalorder %s19, 0
          %s192 = scalar_select %p191, %s19, 0
          %s193 = smul.addr %s190, 16
          %s194 = sadd.s32 %s192, %s193
          %s195 = smul.addr %s194, 4
          %s196 = scalar_lea.vmem %s1, %s195
        $region24: #{tca_forward.1} parent=19 // pred_fallthru
          _
        // Predicated region
        $region25: #{tca_forward.1} parent=19 // pred_check
          %p197 = pneg %p94
        $region26: #{tca_forward.1} parent=19 // pred_check_branch
          %199 = sbr.rel (%p197) target = $region28
        $region27: #{tca_forward.1} parent=19 // pred_region
          %p200 = scmp.lt.s32.totalorder %s18, 1
          %s201 = scalar_select %p200, %s18, 1
          %p202 = scmp.lt.s32.totalorder %s19, 0
          %s203 = scalar_select %p202, %s19, 0
          %s204 = smul.addr %s201, 16
          %s205 = sadd.s32 %s203, %s204
          %s206 = smul.addr %s205, 4
          %s207 = scalar_lea.vmem %s2, %s206
        $region28: #{tca_forward.1} parent=19 // pred_fallthru
          _
        // Predicated region
        $region29: #{tca_forward.1} parent=19 // pred_check
          %p208 = pneg %p122
        $region30: #{tca_forward.1} parent=19 // pred_check_branch
          %210 = sbr.rel (%p208) target = $region32
        $region31: #{tca_forward.1} parent=19 // pred_region
          %p211 = scmp.lt.s32.totalorder %s18, 1
          %s212 = scalar_select %p211, %s18, 1
          %p213 = scmp.lt.s32.totalorder %s19, 0
          %s214 = scalar_select %p213, %s19, 0
          %s215 = smul.addr %s212, 16
          %s216 = sadd.s32 %s214, %s215
          %s217 = smul.addr %s216, 4
          %s218 = scalar_lea.vmem %s3, %s217
        $region32: #{tca_forward.1} parent=19 // pred_fallthru
          _
      $region20: #{tca_forward.1} parent=5 // pred_fallthru
        _
      %p219 = scmp.le.s32.totalorder 1, %s11
      %p220 = scmp.lt.s32.totalorder %s11, 3
      %p221 = pnand %p219, %p220
      %p222 = pneg %p221
      // Predicated region
      $region33: #{tca_forward.1} parent=5 // pred_check
        _
      $region34: #{tca_forward.1} parent=5 // pred_check_branch
        %224 = sbr.rel (%p221) target = $region36
      $region35: #{tca_forward.1} parent=5 // pred_region
        %s225 = ssub.s32 %s11, 1
        // Predicated region
        $region37: #{tca_forward.1} parent=35 // pred_check
          %p226 = pneg %p44
        $region38: #{tca_forward.1} parent=35 // pred_check_branch
          %228 = sbr.rel (%p226) target = $region40
        $region39: #{tca_forward.1} parent=35 // pred_region
          %229 = dma.done [#allocation3], 16
        $region40: #{tca_forward.1} parent=35 // pred_fallthru
          _
        %230 = sfence
        %p231 = pneg %p44
        %p232 = pneg %p41
        %p233 = scmp.lt.s32.totalorder %s20, 1
        %s234 = scalar_select %p233, %s20, 1
        %p235 = scmp.lt.s32.totalorder %s21, 0
        %s236 = scalar_select %p235, %s21, 0
        %s237 = smul.addr %s234, 16
        %s238 = sadd.s32 %s236, %s237
        %s239 = smul.addr %s238, 4
        %s240 = scalar_lea.vmem %s1, %s239
        %p241 = pneg %p72
        %p242 = pneg %p69
        %p243 = scmp.lt.s32.totalorder %s20, 1
        %s244 = scalar_select %p243, %s20, 1
        %p245 = scmp.lt.s32.totalorder %s21, 0
        %s246 = scalar_select %p245, %s21, 0
        %s247 = smul.addr %s244, 16
        %s248 = sadd.s32 %s246, %s247
        %s249 = smul.addr %s248, 4
        %s250 = scalar_lea.vmem %s2, %s249
        %p251 = pneg %p100
        %p252 = pneg %p97
        %p253 = scmp.lt.s32.totalorder %s20, 1
        %s254 = scalar_select %p253, %s20, 1
        %p255 = scmp.lt.s32.totalorder %s21, 0
        %s256 = scalar_select %p255, %s21, 0
        %s257 = smul.addr %s254, 16
        %s258 = sadd.s32 %s256, %s257
        %s259 = smul.addr %s258, 4
        %s260 = scalar_lea.vmem %s3, %s259
        %p261 = pneg %p128
        %p262 = pneg %p125
        %p263 = pneg %p156
        %p264 = pneg %p153
        %p265 = scmp.lt.s32.totalorder %s20, 1
        %s266 = scalar_select %p265, %s20, 1
        %p267 = scmp.lt.s32.totalorder %s21, 0
        %s268 = scalar_select %p267, %s21, 0
        %s269 = smul.addr %s266, 32
        %s270 = sadd.s32 %s268, %s269
        %s271 = smul.addr %s270, 4
        %s272 = scalar_lea.vmem %s4, %s271
        %p273 = scmp.lt.s32.totalorder %s20, 1
        %s274 = scalar_select %p273, %s20, 1
        %p275 = scmp.lt.s32.totalorder %s21, 0
        %s276 = scalar_select %p275, %s21, 0
        %s277 = smul.addr %s274, 16
        %s278 = sadd.s32 %s276, %s277
        %s279 = smul.addr %s278, 4
        %s280 = scalar_lea.vmem %s1, %s279
        %p281 = scmp.lt.s32.totalorder %s20, 1
        %s282 = scalar_select %p281, %s20, 1
        %p283 = scmp.lt.s32.totalorder %s21, 0
        %s284 = scalar_select %p283, %s21, 0
        %s285 = smul.addr %s282, 16
        %s286 = sadd.s32 %s284, %s285
        %s287 = smul.addr %s286, 4
        %s288 = scalar_lea.vmem %s2, %s287
        %p289 = scmp.lt.s32.totalorder %s20, 1
        %s290 = scalar_select %p289, %s20, 1
        %p291 = scmp.lt.s32.totalorder %s21, 0
        %s292 = scalar_select %p291, %s21, 0
        %s293 = smul.addr %s290, 16
        %s294 = sadd.s32 %s292, %s293
        %s295 = smul.addr %s294, 4
        %s296 = scalar_lea.vmem %s3, %s295
        %p297 = scmp.lt.s32.totalorder %s20, 1
        %s298 = scalar_select %p297, %s20, 1
        %p299 = scmp.lt.s32.totalorder %s21, 0
        %s300 = scalar_select %p299, %s21, 0
        %s301 = smul.addr %s298, 32
        %s302 = sadd.s32 %s300, %s301
        %s303 = smul.addr %s302, 4
        %s304 = scalar_lea.vmem %s4, %s303
        %v305 = vld [vmem:[%s280] sm:$0xf]
        %v306 = vld [vmem:[%s280 + $0x4] sm:$0xf]
        %v307 = vld [vmem:[%s280 + $0x8] sm:$0xf]
        %v308 = vld [vmem:[%s280 + $0xc] sm:$0xf]
        %v309 = vmul.f32 %v305, 0.35355338
        %v310 = vmul.f32 %v306, 0.35355338
        %v311 = vmul.f32 %v307, 0.35355338
        %v312 = vmul.f32 %v308, 0.35355338
        %v313 = vld [vmem:[%s288] sm:$0xf]
        %v314 = vld [vmem:[%s288 + $0x4] sm:$0xf]
        %v315 = vld [vmem:[%s288 + $0x8] sm:$0xf]
        %v316 = vld [vmem:[%s288 + $0xc] sm:$0xf]
        %v317 = vld [vmem:[%s296] sm:$0xf]
        %v318 = vld [vmem:[%s296 + $0x4] sm:$0xf]
        %v319 = vld [vmem:[%s296 + $0x8] sm:$0xf]
        %v320 = vld [vmem:[%s296 + $0xc] sm:$0xf]
        %v326 = vunpack.c.l.s4 1966171168
        %v327 = vunpack.c.0.s8 %v326
        %v328 = vlaneseq
        %v329 = vshrl.u32 %v328, 7
        %v330 = vsub.s32 %v327, %v329
        %v331 = vrot.slane %v313, %v330
        %v332 = vcombine.high %v331, %v331
        %v334 = vunpack.c.l.s4 1966171168
        %v335 = vunpack.c.0.s8 %v334
        %v336 = vlaneseq
        %v337 = vshrl.u32 %v336, 7
        %v338 = vsub.s32 %v335, %v337
        %v339 = vrot.slane %v331, %v338
        %v341 = vunpack.c.l.s4 1966171168
        %v342 = vunpack.c.0.s8 %v341
        %v343 = vlaneseq
        %v344 = vshrl.u32 %v343, 7
        %v345 = vsub.s32 %v342, %v344
        %v346 = vrot.slane %v332, %v345
        %v347 = vcombine.high %v339, %v339
        %v348 = vcombine.high %v346, %v346
        %v350 = vunpack.c.l.s4 1966171168
        %v351 = vunpack.c.0.s8 %v350
        %v352 = vlaneseq
        %v353 = vshrl.u32 %v352, 7
        %v354 = vsub.s32 %v351, %v353
        %v355 = vrot.slane %v314, %v354
        %v356 = vcombine.high %v355, %v355
        %v358 = vunpack.c.l.s4 1966171168
        %v359 = vunpack.c.0.s8 %v358
        %v360 = vlaneseq
        %v361 = vshrl.u32 %v360, 7
        %v362 = vsub.s32 %v359, %v361
        %v363 = vrot.slane %v355, %v362
        %v365 = vunpack.c.l.s4 1966171168
        %v366 = vunpack.c.0.s8 %v365
        %v367 = vlaneseq
        %v368 = vshrl.u32 %v367, 7
        %v369 = vsub.s32 %v366, %v368
        %v370 = vrot.slane %v356, %v369
        %v371 = vcombine.high %v363, %v363
        %v372 = vcombine.high %v370, %v370
        %v374 = vunpack.c.l.s4 1966171168
        %v375 = vunpack.c.0.s8 %v374
        %v376 = vlaneseq
        %v377 = vshrl.u32 %v376, 7
        %v378 = vsub.s32 %v375, %v377
        %v379 = vrot.slane %v315, %v378
        %v380 = vcombine.high %v379, %v379
        %v382 = vunpack.c.l.s4 1966171168
        %v383 = vunpack.c.0.s8 %v382
        %v384 = vlaneseq
        %v385 = vshrl.u32 %v384, 7
        %v386 = vsub.s32 %v383, %v385
        %v387 = vrot.slane %v379, %v386
        %v389 = vunpack.c.l.s4 1966171168
        %v390 = vunpack.c.0.s8 %v389
        %v391 = vlaneseq
        %v392 = vshrl.u32 %v391, 7
        %v393 = vsub.s32 %v390, %v392
        %v394 = vrot.slane %v380, %v393
        %v395 = vcombine.high %v387, %v387
        %v396 = vcombine.high %v394, %v394
        %v398 = vunpack.c.l.s4 1966171168
        %v399 = vunpack.c.0.s8 %v398
        %v400 = vlaneseq
        %v401 = vshrl.u32 %v400, 7
        %v402 = vsub.s32 %v399, %v401
        %v403 = vrot.slane %v316, %v402
        %v404 = vcombine.high %v403, %v403
        %v406 = vunpack.c.l.s4 1966171168
        %v407 = vunpack.c.0.s8 %v406
        %v408 = vlaneseq
        %v409 = vshrl.u32 %v408, 7
        %v410 = vsub.s32 %v407, %v409
        %v411 = vrot.slane %v403, %v410
        %v413 = vunpack.c.l.s4 1966171168
        %v414 = vunpack.c.0.s8 %v413
        %v415 = vlaneseq
        %v416 = vshrl.u32 %v415, 7
        %v417 = vsub.s32 %v414, %v416
        %v418 = vrot.slane %v404, %v417
        %v419 = vcombine.high %v411, %v411
        %v420 = vcombine.high %v418, %v418
        %v421 = vlaneseq
        %v422 = vshrl.u32 %v421, 7
        %v423 = vsub.s32 0, %v422
        %v424 = vrot.slane %v339, %v423
        %v425 = vlaneseq
        %v426 = vshrl.u32 %v425, 7
        %v427 = vsub.s32 0, %v426
        %v428 = vrot.slane %v346, %v427
        %v429 = vlaneseq
        %v430 = vshrl.u32 %v429, 7
        %v431 = vsub.s32 0, %v430
        %v432 = vrot.slane %v347, %v431
        %v433 = vlaneseq
        %v434 = vshrl.u32 %v433, 7
        %v435 = vsub.s32 0, %v434
        %v436 = vrot.slane %v348, %v435
        %v437 = vlaneseq
        %v438 = vshrl.u32 %v437, 7
        %v439 = vsub.s32 0, %v438
        %v440 = vrot.slane %v363, %v439
        %v441 = vlaneseq
        %v442 = vshrl.u32 %v441, 7
        %v443 = vsub.s32 0, %v442
        %v444 = vrot.slane %v370, %v443
        %v445 = vlaneseq
        %v446 = vshrl.u32 %v445, 7
        %v447 = vsub.s32 0, %v446
        %v448 = vrot.slane %v371, %v447
        %v449 = vlaneseq
        %v450 = vshrl.u32 %v449, 7
        %v451 = vsub.s32 0, %v450
        %v452 = vrot.slane %v372, %v451
        %v453 = vlaneseq
        %v454 = vshrl.u32 %v453, 7
        %v455 = vsub.s32 0, %v454
        %v456 = vrot.slane %v387, %v455
        %v457 = vlaneseq
        %v458 = vshrl.u32 %v457, 7
        %v459 = vsub.s32 0, %v458
        %v460 = vrot.slane %v394, %v459
        %v461 = vlaneseq
        %v462 = vshrl.u32 %v461, 7
        %v463 = vsub.s32 0, %v462
        %v464 = vrot.slane %v395, %v463
        %v465 = vlaneseq
        %v466 = vshrl.u32 %v465, 7
        %v467 = vsub.s32 0, %v466
        %v468 = vrot.slane %v396, %v467
        %v469 = vlaneseq
        %v470 = vshrl.u32 %v469, 7
        %v471 = vsub.s32 0, %v470
        %v472 = vrot.slane %v411, %v471
        %v473 = vlaneseq
        %v474 = vshrl.u32 %v473, 7
        %v475 = vsub.s32 0, %v474
        %v476 = vrot.slane %v418, %v475
        %v477 = vlaneseq
        %v478 = vshrl.u32 %v477, 7
        %v479 = vsub.s32 0, %v478
        %v480 = vrot.slane %v419, %v479
        %v481 = vlaneseq
        %v482 = vshrl.u32 %v481, 7
        %v483 = vsub.s32 0, %v482
        %v484 = vrot.slane %v420, %v483
        %v501 = vmul.f32 %v424, %v309
        %v502 = vmul.f32 %v428, %v309
        %v503 = vmul.f32 %v432, %v309
        %v504 = vmul.f32 %v436, %v309
        %v505 = vmul.f32 %v440, %v310
        %v506 = vmul.f32 %v444, %v310
        %v507 = vmul.f32 %v448, %v310
        %v508 = vmul.f32 %v452, %v310
        %v509 = vmul.f32 %v456, %v311
        %v510 = vmul.f32 %v460, %v311
        %v511 = vmul.f32 %v464, %v311
        %v512 = vmul.f32 %v468, %v311
        %v513 = vmul.f32 %v472, %v312
        %v514 = vmul.f32 %v476, %v312
        %v515 = vmul.f32 %v480, %v312
        %v516 = vmul.f32 %v484, %v312
        %vm517 = vcmask 1043456
        %v518 = vsel %vm517, %v501, 0.0
        %v519 = vsel %vm517, %v505, 0.0
        %v520 = vadd.f32 %v518, %v519
        %v521 = vsel %vm517, %v509, 0.0
        %v522 = vadd.f32 %v520, %v521
        %v523 = vsel %vm517, %v513, 0.0
        %v524 = vadd.f32 %v522, %v523
        %v525 = vsel %vm517, %v502, 0.0
        %v526 = vsel %vm517, %v506, 0.0
        %v527 = vadd.f32 %v525, %v526
        %v528 = vsel %vm517, %v510, 0.0
        %v529 = vadd.f32 %v527, %v528
        %v530 = vsel %vm517, %v514, 0.0
        %v531 = vadd.f32 %v529, %v530
        %v532 = vsel %vm517, %v503, 0.0
        %v533 = vsel %vm517, %v507, 0.0
        %v534 = vadd.f32 %v532, %v533
        %v535 = vsel %vm517, %v511, 0.0
        %v536 = vadd.f32 %v534, %v535
        %v537 = vsel %vm517, %v515, 0.0
        %v538 = vadd.f32 %v536, %v537
        %v539 = vsel %vm517, %v504, 0.0
        %v540 = vsel %vm517, %v508, 0.0
        %v541 = vadd.f32 %v539, %v540
        %v542 = vsel %vm517, %v512, 0.0
        %v543 = vadd.f32 %v541, %v542
        %v544 = vsel %vm517, %v516, 0.0
        %v545 = vadd.f32 %v543, %v544
        %v546 = vsel %vm517, %v524, -inf
        %v547 = vsel %vm517, %v531, -inf
        %v548 = vsel %vm517, %v538, -inf
        %v549 = vsel %vm517, %v545, -inf
        %v550 = vmax.f32 %v546, %v547
        %v551 = vmax.f32 %v548, %v549
        %v552 = vmax.f32 %v550, %v551
        %v553 = vsub.f32 %v524, %v552
        %v554 = vsub.f32 %v531, %v552
        %v555 = vsub.f32 %v538, %v552
        %v556 = vsub.f32 %v545, %v552
        %v557 = vmul.f32 %v553, 1.442695
        %v558 = vpow.pop %v557
        %v559 = vmul.f32 %v554, 1.442695
        %v560 = vpow.pop %v559
        %v561 = vmul.f32 %v555, 1.442695
        %v562 = vpow.pop %v561
        %v563 = vmul.f32 %v556, 1.442695
        %v564 = vpow.pop %v563
        %v565 = vsel %vm517, %v558, 0.0
        %v566 = vsel %vm517, %v560, 0.0
        %v567 = vadd.f32 %v565, %v566
        %v568 = vsel %vm517, %v562, 0.0
        %v569 = vadd.f32 %v567, %v568
        %v570 = vsel %vm517, %v564, 0.0
        %v571 = vadd.f32 %v569, %v570
        %v577 = vunpack.c.l.s4 1966171168
        %v578 = vunpack.c.0.s8 %v577
        %v579 = vlaneseq
        %v580 = vshrl.u32 %v579, 7
        %v581 = vsub.s32 %v578, %v580
        %v582 = vrot.slane %v317, %v581
        %v583 = vcombine.high %v582, %v582
        %v585 = vunpack.c.l.s4 1966171168
        %v586 = vunpack.c.0.s8 %v585
        %v587 = vlaneseq
        %v588 = vshrl.u32 %v587, 7
        %v589 = vsub.s32 %v586, %v588
        %v590 = vrot.slane %v582, %v589
        %v592 = vunpack.c.l.s4 1966171168
        %v593 = vunpack.c.0.s8 %v592
        %v594 = vlaneseq
        %v595 = vshrl.u32 %v594, 7
        %v596 = vsub.s32 %v593, %v595
        %v597 = vrot.slane %v583, %v596
        %v598 = vcombine.high %v590, %v590
        %v599 = vcombine.high %v597, %v597
        %v601 = vunpack.c.l.s4 1966171168
        %v602 = vunpack.c.0.s8 %v601
        %v603 = vlaneseq
        %v604 = vshrl.u32 %v603, 7
        %v605 = vsub.s32 %v602, %v604
        %v606 = vrot.slane %v318, %v605
        %v607 = vcombine.high %v606, %v606
        %v609 = vunpack.c.l.s4 1966171168
        %v610 = vunpack.c.0.s8 %v609
        %v611 = vlaneseq
        %v612 = vshrl.u32 %v611, 7
        %v613 = vsub.s32 %v610, %v612
        %v614 = vrot.slane %v606, %v613
        %v616 = vunpack.c.l.s4 1966171168
        %v617 = vunpack.c.0.s8 %v616
        %v618 = vlaneseq
        %v619 = vshrl.u32 %v618, 7
        %v620 = vsub.s32 %v617, %v619
        %v621 = vrot.slane %v607, %v620
        %v622 = vcombine.high %v614, %v614
        %v623 = vcombine.high %v621, %v621
        %v625 = vunpack.c.l.s4 1966171168
        %v626 = vunpack.c.0.s8 %v625
        %v627 = vlaneseq
        %v628 = vshrl.u32 %v627, 7
        %v629 = vsub.s32 %v626, %v628
        %v630 = vrot.slane %v319, %v629
        %v631 = vcombine.high %v630, %v630
        %v633 = vunpack.c.l.s4 1966171168
        %v634 = vunpack.c.0.s8 %v633
        %v635 = vlaneseq
        %v636 = vshrl.u32 %v635, 7
        %v637 = vsub.s32 %v634, %v636
        %v638 = vrot.slane %v630, %v637
        %v640 = vunpack.c.l.s4 1966171168
        %v641 = vunpack.c.0.s8 %v640
        %v642 = vlaneseq
        %v643 = vshrl.u32 %v642, 7
        %v644 = vsub.s32 %v641, %v643
        %v645 = vrot.slane %v631, %v644
        %v646 = vcombine.high %v638, %v638
        %v647 = vcombine.high %v645, %v645
        %v649 = vunpack.c.l.s4 1966171168
        %v650 = vunpack.c.0.s8 %v649
        %v651 = vlaneseq
        %v652 = vshrl.u32 %v651, 7
        %v653 = vsub.s32 %v650, %v652
        %v654 = vrot.slane %v320, %v653
        %v655 = vcombine.high %v654, %v654
        %v657 = vunpack.c.l.s4 1966171168
        %v658 = vunpack.c.0.s8 %v657
        %v659 = vlaneseq
        %v660 = vshrl.u32 %v659, 7
        %v661 = vsub.s32 %v658, %v660
        %v662 = vrot.slane %v654, %v661
        %v664 = vunpack.c.l.s4 1966171168
        %v665 = vunpack.c.0.s8 %v664
        %v666 = vlaneseq
        %v667 = vshrl.u32 %v666, 7
        %v668 = vsub.s32 %v665, %v667
        %v669 = vrot.slane %v655, %v668
        %v670 = vcombine.high %v662, %v662
        %v671 = vcombine.high %v669, %v669
        %v672 = vlaneseq
        %v673 = vshrl.u32 %v672, 7
        %v674 = vsub.s32 0, %v673
        %v675 = vrot.slane %v590, %v674
        %v676 = vlaneseq
        %v677 = vshrl.u32 %v676, 7
        %v678 = vsub.s32 0, %v677
        %v679 = vrot.slane %v597, %v678
        %v680 = vlaneseq
        %v681 = vshrl.u32 %v680, 7
        %v682 = vsub.s32 0, %v681
        %v683 = vrot.slane %v598, %v682
        %v684 = vlaneseq
        %v685 = vshrl.u32 %v684, 7
        %v686 = vsub.s32 0, %v685
        %v687 = vrot.slane %v599, %v686
        %v688 = vlaneseq
        %v689 = vshrl.u32 %v688, 7
        %v690 = vsub.s32 0, %v689
        %v691 = vrot.slane %v614, %v690
        %v692 = vlaneseq
        %v693 = vshrl.u32 %v692, 7
        %v694 = vsub.s32 0, %v693
        %v695 = vrot.slane %v621, %v694
        %v696 = vlaneseq
        %v697 = vshrl.u32 %v696, 7
        %v698 = vsub.s32 0, %v697
        %v699 = vrot.slane %v622, %v698
        %v700 = vlaneseq
        %v701 = vshrl.u32 %v700, 7
        %v702 = vsub.s32 0, %v701
        %v703 = vrot.slane %v623, %v702
        %v704 = vlaneseq
        %v705 = vshrl.u32 %v704, 7
        %v706 = vsub.s32 0, %v705
        %v707 = vrot.slane %v638, %v706
        %v708 = vlaneseq
        %v709 = vshrl.u32 %v708, 7
        %v710 = vsub.s32 0, %v709
        %v711 = vrot.slane %v645, %v710
        %v712 = vlaneseq
        %v713 = vshrl.u32 %v712, 7
        %v714 = vsub.s32 0, %v713
        %v715 = vrot.slane %v646, %v714
        %v716 = vlaneseq
        %v717 = vshrl.u32 %v716, 7
        %v718 = vsub.s32 0, %v717
        %v719 = vrot.slane %v647, %v718
        %v720 = vlaneseq
        %v721 = vshrl.u32 %v720, 7
        %v722 = vsub.s32 0, %v721
        %v723 = vrot.slane %v662, %v722
        %v724 = vlaneseq
        %v725 = vshrl.u32 %v724, 7
        %v726 = vsub.s32 0, %v725
        %v727 = vrot.slane %v669, %v726
        %v728 = vlaneseq
        %v729 = vshrl.u32 %v728, 7
        %v730 = vsub.s32 0, %v729
        %v731 = vrot.slane %v670, %v730
        %v732 = vlaneseq
        %v733 = vshrl.u32 %v732, 7
        %v734 = vsub.s32 0, %v733
        %v735 = vrot.slane %v671, %v734
        %v752 = vmul.f32 %v558, %v675
        %v753 = vmul.f32 %v560, %v679
        %v754 = vmul.f32 %v562, %v683
        %v755 = vmul.f32 %v564, %v687
        %v756 = vmul.f32 %v558, %v691
        %v757 = vmul.f32 %v560, %v695
        %v758 = vmul.f32 %v562, %v699
        %v759 = vmul.f32 %v564, %v703
        %v760 = vmul.f32 %v558, %v707
        %v761 = vmul.f32 %v560, %v711
        %v762 = vmul.f32 %v562, %v715
        %v763 = vmul.f32 %v564, %v719
        %v764 = vmul.f32 %v558, %v723
        %v765 = vmul.f32 %v560, %v727
        %v766 = vmul.f32 %v562, %v731
        %v767 = vmul.f32 %v564, %v735
        %v768 = vsel %vm517, %v752, 0.0
        %v769 = vsel %vm517, %v753, 0.0
        %v770 = vadd.f32 %v768, %v769
        %v771 = vsel %vm517, %v754, 0.0
        %v772 = vadd.f32 %v770, %v771
        %v773 = vsel %vm517, %v755, 0.0
        %v774 = vadd.f32 %v772, %v773
        %v775 = vsel %vm517, %v756, 0.0
        %v776 = vsel %vm517, %v757, 0.0
        %v777 = vadd.f32 %v775, %v776
        %v778 = vsel %vm517, %v758, 0.0
        %v779 = vadd.f32 %v777, %v778
        %v780 = vsel %vm517, %v759, 0.0
        %v781 = vadd.f32 %v779, %v780
        %v782 = vsel %vm517, %v760, 0.0
        %v783 = vsel %vm517, %v761, 0.0
        %v784 = vadd.f32 %v782, %v783
        %v785 = vsel %vm517, %v762, 0.0
        %v786 = vadd.f32 %v784, %v785
        %v787 = vsel %vm517, %v763, 0.0
        %v788 = vadd.f32 %v786, %v787
        %v789 = vsel %vm517, %v764, 0.0
        %v790 = vsel %vm517, %v765, 0.0
        %v791 = vadd.f32 %v789, %v790
        %v792 = vsel %vm517, %v766, 0.0
        %v793 = vadd.f32 %v791, %v792
        %v794 = vsel %vm517, %v767, 0.0
        %v795 = vadd.f32 %v793, %v794
        %v796 = vrcp.pop %v571
        %v797 = vmul.f32 %v774, %v796
        %v798 = vmul.f32 %v781, %v796
        %v799 = vmul.f32 %v788, %v796
        %v800 = vmul.f32 %v795, %v796
        %s801 = sld [smem:[#allocation2]]
        %v802 = vstv %s801
        %v803 = vmul.f32 %v797, %v802
        %804 = vst [vmem:[%s304] sm:$0xf] %v803
        %s805 = sld [smem:[#allocation2 + $0x1]]
        %v806 = vstv %s805
        %v807 = vmul.f32 %v797, %v806
        %s808 = scalar_lea.vmem %s304, 4
        %809 = vst [vmem:[%s808] sm:$0xf] %v807
        %s810 = sld [smem:[#allocation2 + $0x2]]
        %v811 = vstv %s810
        %v812 = vmul.f32 %v798, %v811
        %s813 = scalar_lea.vmem %s304, 8
        %814 = vst [vmem:[%s813] sm:$0xf] %v812
        %s815 = sld [smem:[#allocation2 + $0x3]]
        %v816 = vstv %s815
        %v817 = vmul.f32 %v798, %v816
        %s818 = scalar_lea.vmem %s304, 12
        %819 = vst [vmem:[%s818] sm:$0xf] %v817
        %s820 = sld [smem:[#allocation2 + $0x4]]
        %v821 = vstv %s820
        %v822 = vmul.f32 %v799, %v821
        %s823 = scalar_lea.vmem %s304, 16
        %824 = vst [vmem:[%s823] sm:$0xf] %v822
        %s825 = sld [smem:[#allocation2 + $0x5]]
        %v826 = vstv %s825
        %v827 = vmul.f32 %v799, %v826
        %s828 = scalar_lea.vmem %s304, 20
        %829 = vst [vmem:[%s828] sm:$0xf] %v827
        %s830 = sld [smem:[#allocation2 + $0x6]]
        %v831 = vstv %s830
        %v832 = vmul.f32 %v800, %v831
        %s833 = scalar_lea.vmem %s304, 24
        %834 = vst [vmem:[%s833] sm:$0xf] %v832
        %s835 = sld [smem:[#allocation2 + $0x7]]
        %v836 = vstv %s835
        %v837 = vmul.f32 %v800, %v836
        %s838 = scalar_lea.vmem %s304, 28
        %839 = vst [vmem:[%s838] sm:$0xf] %v837
        %s840 = scalar_lea.vmem %s280, 16
        %v841 = vld [vmem:[%s840] sm:$0xf]
        %v842 = vld [vmem:[%s840 + $0x4] sm:$0xf]
        %v843 = vld [vmem:[%s840 + $0x8] sm:$0xf]
        %v844 = vld [vmem:[%s840 + $0xc] sm:$0xf]
        %v845 = vmul.f32 %v841, 0.35355338
        %v846 = vmul.f32 %v842, 0.35355338
        %v847 = vmul.f32 %v843, 0.35355338
        %v848 = vmul.f32 %v844, 0.35355338
        %s849 = scalar_lea.vmem %s288, 16
        %v850 = vld [vmem:[%s849] sm:$0xf]
        %v851 = vld [vmem:[%s849 + $0x4] sm:$0xf]
        %v852 = vld [vmem:[%s849 + $0x8] sm:$0xf]
        %v853 = vld [vmem:[%s849 + $0xc] sm:$0xf]
        %s854 = scalar_lea.vmem %s296, 16
        %v855 = vld [vmem:[%s854] sm:$0xf]
        %v856 = vld [vmem:[%s854 + $0x4] sm:$0xf]
        %v857 = vld [vmem:[%s854 + $0x8] sm:$0xf]
        %v858 = vld [vmem:[%s854 + $0xc] sm:$0xf]
        %v864 = vunpack.c.l.s4 1966171168
        %v865 = vunpack.c.0.s8 %v864
        %v866 = vlaneseq
        %v867 = vshrl.u32 %v866, 7
        %v868 = vsub.s32 %v865, %v867
        %v869 = vrot.slane %v850, %v868
        %v870 = vcombine.high %v869, %v869
        %v872 = vunpack.c.l.s4 1966171168
        %v873 = vunpack.c.0.s8 %v872
        %v874 = vlaneseq
        %v875 = vshrl.u32 %v874, 7
        %v876 = vsub.s32 %v873, %v875
        %v877 = vrot.slane %v869, %v876
        %v879 = vunpack.c.l.s4 1966171168
        %v880 = vunpack.c.0.s8 %v879
        %v881 = vlaneseq
        %v882 = vshrl.u32 %v881, 7
        %v883 = vsub.s32 %v880, %v882
        %v884 = vrot.slane %v870, %v883
        %v885 = vcombine.high %v877, %v877
        %v886 = vcombine.high %v884, %v884
        %v888 = vunpack.c.l.s4 1966171168
        %v889 = vunpack.c.0.s8 %v888
        %v890 = vlaneseq
        %v891 = vshrl.u32 %v890, 7
        %v892 = vsub.s32 %v889, %v891
        %v893 = vrot.slane %v851, %v892
        %v894 = vcombine.high %v893, %v893
        %v896 = vunpack.c.l.s4 1966171168
        %v897 = vunpack.c.0.s8 %v896
        %v898 = vlaneseq
        %v899 = vshrl.u32 %v898, 7
        %v900 = vsub.s32 %v897, %v899
        %v901 = vrot.slane %v893, %v900
        %v903 = vunpack.c.l.s4 1966171168
        %v904 = vunpack.c.0.s8 %v903
        %v905 = vlaneseq
        %v906 = vshrl.u32 %v905, 7
        %v907 = vsub.s32 %v904, %v906
        %v908 = vrot.slane %v894, %v907
        %v909 = vcombine.high %v901, %v901
        %v910 = vcombine.high %v908, %v908
        %v912 = vunpack.c.l.s4 1966171168
        %v913 = vunpack.c.0.s8 %v912
        %v914 = vlaneseq
        %v915 = vshrl.u32 %v914, 7
        %v916 = vsub.s32 %v913, %v915
        %v917 = vrot.slane %v852, %v916
        %v918 = vcombine.high %v917, %v917
        %v920 = vunpack.c.l.s4 1966171168
        %v921 = vunpack.c.0.s8 %v920
        %v922 = vlaneseq
        %v923 = vshrl.u32 %v922, 7
        %v924 = vsub.s32 %v921, %v923
        %v925 = vrot.slane %v917, %v924
        %v927 = vunpack.c.l.s4 1966171168
        %v928 = vunpack.c.0.s8 %v927
        %v929 = vlaneseq
        %v930 = vshrl.u32 %v929, 7
        %v931 = vsub.s32 %v928, %v930
        %v932 = vrot.slane %v918, %v931
        %v933 = vcombine.high %v925, %v925
        %v934 = vcombine.high %v932, %v932
        %v936 = vunpack.c.l.s4 1966171168
        %v937 = vunpack.c.0.s8 %v936
        %v938 = vlaneseq
        %v939 = vshrl.u32 %v938, 7
        %v940 = vsub.s32 %v937, %v939
        %v941 = vrot.slane %v853, %v940
        %v942 = vcombine.high %v941, %v941
        %v944 = vunpack.c.l.s4 1966171168
        %v945 = vunpack.c.0.s8 %v944
        %v946 = vlaneseq
        %v947 = vshrl.u32 %v946, 7
        %v948 = vsub.s32 %v945, %v947
        %v949 = vrot.slane %v941, %v948
        %v951 = vunpack.c.l.s4 1966171168
        %v952 = vunpack.c.0.s8 %v951
        %v953 = vlaneseq
        %v954 = vshrl.u32 %v953, 7
        %v955 = vsub.s32 %v952, %v954
        %v956 = vrot.slane %v942, %v955
        %v957 = vcombine.high %v949, %v949
        %v958 = vcombine.high %v956, %v956
        %v959 = vlaneseq
        %v960 = vshrl.u32 %v959, 7
        %v961 = vsub.s32 0, %v960
        %v962 = vrot.slane %v877, %v961
        %v963 = vlaneseq
        %v964 = vshrl.u32 %v963, 7
        %v965 = vsub.s32 0, %v964
        %v966 = vrot.slane %v884, %v965
        %v967 = vlaneseq
        %v968 = vshrl.u32 %v967, 7
        %v969 = vsub.s32 0, %v968
        %v970 = vrot.slane %v885, %v969
        %v971 = vlaneseq
        %v972 = vshrl.u32 %v971, 7
        %v973 = vsub.s32 0, %v972
        %v974 = vrot.slane %v886, %v973
        %v975 = vlaneseq
        %v976 = vshrl.u32 %v975, 7
        %v977 = vsub.s32 0, %v976
        %v978 = vrot.slane %v901, %v977
        %v979 = vlaneseq
        %v980 = vshrl.u32 %v979, 7
        %v981 = vsub.s32 0, %v980
        %v982 = vrot.slane %v908, %v981
        %v983 = vlaneseq
        %v984 = vshrl.u32 %v983, 7
        %v985 = vsub.s32 0, %v984
        %v986 = vrot.slane %v909, %v985
        %v987 = vlaneseq
        %v988 = vshrl.u32 %v987, 7
        %v989 = vsub.s32 0, %v988
        %v990 = vrot.slane %v910, %v989
        %v991 = vlaneseq
        %v992 = vshrl.u32 %v991, 7
        %v993 = vsub.s32 0, %v992
        %v994 = vrot.slane %v925, %v993
        %v995 = vlaneseq
        %v996 = vshrl.u32 %v995, 7
        %v997 = vsub.s32 0, %v996
        %v998 = vrot.slane %v932, %v997
        %v999 = vlaneseq
        %v1000 = vshrl.u32 %v999, 7
        %v1001 = vsub.s32 0, %v1000
        %v1002 = vrot.slane %v933, %v1001
        %v1003 = vlaneseq
        %v1004 = vshrl.u32 %v1003, 7
        %v1005 = vsub.s32 0, %v1004
        %v1006 = vrot.slane %v934, %v1005
        %v1007 = vlaneseq
        %v1008 = vshrl.u32 %v1007, 7
        %v1009 = vsub.s32 0, %v1008
        %v1010 = vrot.slane %v949, %v1009
        %v1011 = vlaneseq
        %v1012 = vshrl.u32 %v1011, 7
        %v1013 = vsub.s32 0, %v1012
        %v1014 = vrot.slane %v956, %v1013
        %v1015 = vlaneseq
        %v1016 = vshrl.u32 %v1015, 7
        %v1017 = vsub.s32 0, %v1016
        %v1018 = vrot.slane %v957, %v1017
        %v1019 = vlaneseq
        %v1020 = vshrl.u32 %v1019, 7
        %v1021 = vsub.s32 0, %v1020
        %v1022 = vrot.slane %v958, %v1021
        %v1039 = vmul.f32 %v962, %v845
        %v1040 = vmul.f32 %v966, %v845
        %v1041 = vmul.f32 %v970, %v845
        %v1042 = vmul.f32 %v974, %v845
        %v1043 = vmul.f32 %v978, %v846
        %v1044 = vmul.f32 %v982, %v846
        %v1045 = vmul.f32 %v986, %v846
        %v1046 = vmul.f32 %v990, %v846
        %v1047 = vmul.f32 %v994, %v847
        %v1048 = vmul.f32 %v998, %v847
        %v1049 = vmul.f32 %v1002, %v847
        %v1050 = vmul.f32 %v1006, %v847
        %v1051 = vmul.f32 %v1010, %v848
        %v1052 = vmul.f32 %v1014, %v848
        %v1053 = vmul.f32 %v1018, %v848
        %v1054 = vmul.f32 %v1022, %v848
        %v1055 = vsel %vm517, %v1039, 0.0
        %v1056 = vsel %vm517, %v1043, 0.0
        %v1057 = vadd.f32 %v1055, %v1056
        %v1058 = vsel %vm517, %v1047, 0.0
        %v1059 = vadd.f32 %v1057, %v1058
        %v1060 = vsel %vm517, %v1051, 0.0
        %v1061 = vadd.f32 %v1059, %v1060
        %v1062 = vsel %vm517, %v1040, 0.0
        %v1063 = vsel %vm517, %v1044, 0.0
        %v1064 = vadd.f32 %v1062, %v1063
        %v1065 = vsel %vm517, %v1048, 0.0
        %v1066 = vadd.f32 %v1064, %v1065
        %v1067 = vsel %vm517, %v1052, 0.0
        %v1068 = vadd.f32 %v1066, %v1067
        %v1069 = vsel %vm517, %v1041, 0.0
        %v1070 = vsel %vm517, %v1045, 0.0
        %v1071 = vadd.f32 %v1069, %v1070
        %v1072 = vsel %vm517, %v1049, 0.0
        %v1073 = vadd.f32 %v1071, %v1072
        %v1074 = vsel %vm517, %v1053, 0.0
        %v1075 = vadd.f32 %v1073, %v1074
        %v1076 = vsel %vm517, %v1042, 0.0
        %v1077 = vsel %vm517, %v1046, 0.0
        %v1078 = vadd.f32 %v1076, %v1077
        %v1079 = vsel %vm517, %v1050, 0.0
        %v1080 = vadd.f32 %v1078, %v1079
        %v1081 = vsel %vm517, %v1054, 0.0
        %v1082 = vadd.f32 %v1080, %v1081
        %v1083 = vsel %vm517, %v1061, -inf
        %v1084 = vsel %vm517, %v1068, -inf
        %v1085 = vsel %vm517, %v1075, -inf
        %v1086 = vsel %vm517, %v1082, -inf
        %v1087 = vmax.f32 %v1083, %v1084
        %v1088 = vmax.f32 %v1085, %v1086
        %v1089 = vmax.f32 %v1087, %v1088
        %v1090 = vsub.f32 %v1061, %v1089
        %v1091 = vsub.f32 %v1068, %v1089
        %v1092 = vsub.f32 %v1075, %v1089
        %v1093 = vsub.f32 %v1082, %v1089
        %v1094 = vmul.f32 %v1090, 1.442695
        %v1095 = vpow.pop %v1094
        %v1096 = vmul.f32 %v1091, 1.442695
        %v1097 = vpow.pop %v1096
        %v1098 = vmul.f32 %v1092, 1.442695
        %v1099 = vpow.pop %v1098
        %v1100 = vmul.f32 %v1093, 1.442695
        %v1101 = vpow.pop %v1100
        %v1102 = vsel %vm517, %v1095, 0.0
        %v1103 = vsel %vm517, %v1097, 0.0
        %v1104 = vadd.f32 %v1102, %v1103
        %v1105 = vsel %vm517, %v1099, 0.0
        %v1106 = vadd.f32 %v1104, %v1105
        %v1107 = vsel %vm517, %v1101, 0.0
        %v1108 = vadd.f32 %v1106, %v1107
        %v1114 = vunpack.c.l.s4 1966171168
        %v1115 = vunpack.c.0.s8 %v1114
        %v1116 = vlaneseq
        %v1117 = vshrl.u32 %v1116, 7
        %v1118 = vsub.s32 %v1115, %v1117
        %v1119 = vrot.slane %v855, %v1118
        %v1120 = vcombine.high %v1119, %v1119
        %v1122 = vunpack.c.l.s4 1966171168
        %v1123 = vunpack.c.0.s8 %v1122
        %v1124 = vlaneseq
        %v1125 = vshrl.u32 %v1124, 7
        %v1126 = vsub.s32 %v1123, %v1125
        %v1127 = vrot.slane %v1119, %v1126
        %v1129 = vunpack.c.l.s4 1966171168
        %v1130 = vunpack.c.0.s8 %v1129
        %v1131 = vlaneseq
        %v1132 = vshrl.u32 %v1131, 7
        %v1133 = vsub.s32 %v1130, %v1132
        %v1134 = vrot.slane %v1120, %v1133
        %v1135 = vcombine.high %v1127, %v1127
        %v1136 = vcombine.high %v1134, %v1134
        %v1138 = vunpack.c.l.s4 1966171168
        %v1139 = vunpack.c.0.s8 %v1138
        %v1140 = vlaneseq
        %v1141 = vshrl.u32 %v1140, 7
        %v1142 = vsub.s32 %v1139, %v1141
        %v1143 = vrot.slane %v856, %v1142
        %v1144 = vcombine.high %v1143, %v1143
        %v1146 = vunpack.c.l.s4 1966171168
        %v1147 = vunpack.c.0.s8 %v1146
        %v1148 = vlaneseq
        %v1149 = vshrl.u32 %v1148, 7
        %v1150 = vsub.s32 %v1147, %v1149
        %v1151 = vrot.slane %v1143, %v1150
        %v1153 = vunpack.c.l.s4 1966171168
        %v1154 = vunpack.c.0.s8 %v1153
        %v1155 = vlaneseq
        %v1156 = vshrl.u32 %v1155, 7
        %v1157 = vsub.s32 %v1154, %v1156
        %v1158 = vrot.slane %v1144, %v1157
        %v1159 = vcombine.high %v1151, %v1151
        %v1160 = vcombine.high %v1158, %v1158
        %v1162 = vunpack.c.l.s4 1966171168
        %v1163 = vunpack.c.0.s8 %v1162
        %v1164 = vlaneseq
        %v1165 = vshrl.u32 %v1164, 7
        %v1166 = vsub.s32 %v1163, %v1165
        %v1167 = vrot.slane %v857, %v1166
        %v1168 = vcombine.high %v1167, %v1167
        %v1170 = vunpack.c.l.s4 1966171168
        %v1171 = vunpack.c.0.s8 %v1170
        %v1172 = vlaneseq
        %v1173 = vshrl.u32 %v1172, 7
        %v1174 = vsub.s32 %v1171, %v1173
        %v1175 = vrot.slane %v1167, %v1174
        %v1177 = vunpack.c.l.s4 1966171168
        %v1178 = vunpack.c.0.s8 %v1177
        %v1179 = vlaneseq
        %v1180 = vshrl.u32 %v1179, 7
        %v1181 = vsub.s32 %v1178, %v1180
        %v1182 = vrot.slane %v1168, %v1181
        %v1183 = vcombine.high %v1175, %v1175
        %v1184 = vcombine.high %v1182, %v1182
        %v1186 = vunpack.c.l.s4 1966171168
        %v1187 = vunpack.c.0.s8 %v1186
        %v1188 = vlaneseq
        %v1189 = vshrl.u32 %v1188, 7
        %v1190 = vsub.s32 %v1187, %v1189
        %v1191 = vrot.slane %v858, %v1190
        %v1192 = vcombine.high %v1191, %v1191
        %v1194 = vunpack.c.l.s4 1966171168
        %v1195 = vunpack.c.0.s8 %v1194
        %v1196 = vlaneseq
        %v1197 = vshrl.u32 %v1196, 7
        %v1198 = vsub.s32 %v1195, %v1197
        %v1199 = vrot.slane %v1191, %v1198
        %v1201 = vunpack.c.l.s4 1966171168
        %v1202 = vunpack.c.0.s8 %v1201
        %v1203 = vlaneseq
        %v1204 = vshrl.u32 %v1203, 7
        %v1205 = vsub.s32 %v1202, %v1204
        %v1206 = vrot.slane %v1192, %v1205
        %v1207 = vcombine.high %v1199, %v1199
        %v1208 = vcombine.high %v1206, %v1206
        %v1209 = vlaneseq
        %v1210 = vshrl.u32 %v1209, 7
        %v1211 = vsub.s32 0, %v1210
        %v1212 = vrot.slane %v1127, %v1211
        %v1213 = vlaneseq
        %v1214 = vshrl.u32 %v1213, 7
        %v1215 = vsub.s32 0, %v1214
        %v1216 = vrot.slane %v1134, %v1215
        %v1217 = vlaneseq
        %v1218 = vshrl.u32 %v1217, 7
        %v1219 = vsub.s32 0, %v1218
        %v1220 = vrot.slane %v1135, %v1219
        %v1221 = vlaneseq
        %v1222 = vshrl.u32 %v1221, 7
        %v1223 = vsub.s32 0, %v1222
        %v1224 = vrot.slane %v1136, %v1223
        %v1225 = vlaneseq
        %v1226 = vshrl.u32 %v1225, 7
        %v1227 = vsub.s32 0, %v1226
        %v1228 = vrot.slane %v1151, %v1227
        %v1229 = vlaneseq
        %v1230 = vshrl.u32 %v1229, 7
        %v1231 = vsub.s32 0, %v1230
        %v1232 = vrot.slane %v1158, %v1231
        %v1233 = vlaneseq
        %v1234 = vshrl.u32 %v1233, 7
        %v1235 = vsub.s32 0, %v1234
        %v1236 = vrot.slane %v1159, %v1235
        %v1237 = vlaneseq
        %v1238 = vshrl.u32 %v1237, 7
        %v1239 = vsub.s32 0, %v1238
        %v1240 = vrot.slane %v1160, %v1239
        %v1241 = vlaneseq
        %v1242 = vshrl.u32 %v1241, 7
        %v1243 = vsub.s32 0, %v1242
        %v1244 = vrot.slane %v1175, %v1243
        %v1245 = vlaneseq
        %v1246 = vshrl.u32 %v1245, 7
        %v1247 = vsub.s32 0, %v1246
        %v1248 = vrot.slane %v1182, %v1247
        %v1249 = vlaneseq
        %v1250 = vshrl.u32 %v1249, 7
        %v1251 = vsub.s32 0, %v1250
        %v1252 = vrot.slane %v1183, %v1251
        %v1253 = vlaneseq
        %v1254 = vshrl.u32 %v1253, 7
        %v1255 = vsub.s32 0, %v1254
        %v1256 = vrot.slane %v1184, %v1255
        %v1257 = vlaneseq
        %v1258 = vshrl.u32 %v1257, 7
        %v1259 = vsub.s32 0, %v1258
        %v1260 = vrot.slane %v1199, %v1259
        %v1261 = vlaneseq
        %v1262 = vshrl.u32 %v1261, 7
        %v1263 = vsub.s32 0, %v1262
        %v1264 = vrot.slane %v1206, %v1263
        %v1265 = vlaneseq
        %v1266 = vshrl.u32 %v1265, 7
        %v1267 = vsub.s32 0, %v1266
        %v1268 = vrot.slane %v1207, %v1267
        %v1269 = vlaneseq
        %v1270 = vshrl.u32 %v1269, 7
        %v1271 = vsub.s32 0, %v1270
        %v1272 = vrot.slane %v1208, %v1271
        %v1289 = vmul.f32 %v1095, %v1212
        %v1290 = vmul.f32 %v1097, %v1216
        %v1291 = vmul.f32 %v1099, %v1220
        %v1292 = vmul.f32 %v1101, %v1224
        %v1293 = vmul.f32 %v1095, %v1228
        %v1294 = vmul.f32 %v1097, %v1232
        %v1295 = vmul.f32 %v1099, %v1236
        %v1296 = vmul.f32 %v1101, %v1240
        %v1297 = vmul.f32 %v1095, %v1244
        %v1298 = vmul.f32 %v1097, %v1248
        %v1299 = vmul.f32 %v1099, %v1252
        %v1300 = vmul.f32 %v1101, %v1256
        %v1301 = vmul.f32 %v1095, %v1260
        %v1302 = vmul.f32 %v1097, %v1264
        %v1303 = vmul.f32 %v1099, %v1268
        %v1304 = vmul.f32 %v1101, %v1272
        %v1305 = vsel %vm517, %v1289, 0.0
        %v1306 = vsel %vm517, %v1290, 0.0
        %v1307 = vadd.f32 %v1305, %v1306
        %v1308 = vsel %vm517, %v1291, 0.0
        %v1309 = vadd.f32 %v1307, %v1308
        %v1310 = vsel %vm517, %v1292, 0.0
        %v1311 = vadd.f32 %v1309, %v1310
        %v1312 = vsel %vm517, %v1293, 0.0
        %v1313 = vsel %vm517, %v1294, 0.0
        %v1314 = vadd.f32 %v1312, %v1313
        %v1315 = vsel %vm517, %v1295, 0.0
        %v1316 = vadd.f32 %v1314, %v1315
        %v1317 = vsel %vm517, %v1296, 0.0
        %v1318 = vadd.f32 %v1316, %v1317
        %v1319 = vsel %vm517, %v1297, 0.0
        %v1320 = vsel %vm517, %v1298, 0.0
        %v1321 = vadd.f32 %v1319, %v1320
        %v1322 = vsel %vm517, %v1299, 0.0
        %v1323 = vadd.f32 %v1321, %v1322
        %v1324 = vsel %vm517, %v1300, 0.0
        %v1325 = vadd.f32 %v1323, %v1324
        %v1326 = vsel %vm517, %v1301, 0.0
        %v1327 = vsel %vm517, %v1302, 0.0
        %v1328 = vadd.f32 %v1326, %v1327
        %v1329 = vsel %vm517, %v1303, 0.0
        %v1330 = vadd.f32 %v1328, %v1329
        %v1331 = vsel %vm517, %v1304, 0.0
        %v1332 = vadd.f32 %v1330, %v1331
        %v1333 = vrcp.pop %v1108
        %v1334 = vmul.f32 %v1311, %v1333
        %v1335 = vmul.f32 %v1318, %v1333
        %v1336 = vmul.f32 %v1325, %v1333
        %v1337 = vmul.f32 %v1332, %v1333
        %s1338 = sld [smem:[#allocation2 + $0x8]]
        %v1339 = vstv %s1338
        %v1340 = vmul.f32 %v1334, %v1339
        %s1341 = scalar_lea.vmem %s304, 32
        %1342 = vst [vmem:[%s1341] sm:$0xf] %v1340
        %s1343 = sld [smem:[#allocation2 + $0x9]]
        %v1344 = vstv %s1343
        %v1345 = vmul.f32 %v1334, %v1344
        %s1346 = scalar_lea.vmem %s304, 36
        %1347 = vst [vmem:[%s1346] sm:$0xf] %v1345
        %s1348 = sld [smem:[#allocation2 + $0xa]]
        %v1349 = vstv %s1348
        %v1350 = vmul.f32 %v1335, %v1349
        %s1351 = scalar_lea.vmem %s304, 40
        %1352 = vst [vmem:[%s1351] sm:$0xf] %v1350
        %s1353 = sld [smem:[#allocation2 + $0xb]]
        %v1354 = vstv %s1353
        %v1355 = vmul.f32 %v1335, %v1354
        %s1356 = scalar_lea.vmem %s304, 44
        %1357 = vst [vmem:[%s1356] sm:$0xf] %v1355
        %s1358 = sld [smem:[#allocation2 + $0xc]]
        %v1359 = vstv %s1358
        %v1360 = vmul.f32 %v1336, %v1359
        %s1361 = scalar_lea.vmem %s304, 48
        %1362 = vst [vmem:[%s1361] sm:$0xf] %v1360
        %s1363 = sld [smem:[#allocation2 + $0xd]]
        %v1364 = vstv %s1363
        %v1365 = vmul.f32 %v1336, %v1364
        %s1366 = scalar_lea.vmem %s304, 52
        %1367 = vst [vmem:[%s1366] sm:$0xf] %v1365
        %s1368 = sld [smem:[#allocation2 + $0xe]]
        %v1369 = vstv %s1368
        %v1370 = vmul.f32 %v1337, %v1369
        %s1371 = scalar_lea.vmem %s304, 56
        %1372 = vst [vmem:[%s1371] sm:$0xf] %v1370
        %s1373 = sld [smem:[#allocation2 + $0xf]]
        %v1374 = vstv %s1373
        %v1375 = vmul.f32 %v1337, %v1374
        %s1376 = scalar_lea.vmem %s304, 60
        %1377 = vst [vmem:[%s1376] sm:$0xf] %v1375
        %s1378 = scalar_lea.vmem %s280, 32
        %v1379 = vld [vmem:[%s1378] sm:$0xf]
        %v1380 = vld [vmem:[%s1378 + $0x4] sm:$0xf]
        %v1381 = vld [vmem:[%s1378 + $0x8] sm:$0xf]
        %v1382 = vld [vmem:[%s1378 + $0xc] sm:$0xf]
        %v1383 = vmul.f32 %v1379, 0.35355338
        %v1384 = vmul.f32 %v1380, 0.35355338
        %v1385 = vmul.f32 %v1381, 0.35355338
        %v1386 = vmul.f32 %v1382, 0.35355338
        %s1387 = scalar_lea.vmem %s288, 32
        %v1388 = vld [vmem:[%s1387] sm:$0xf]
        %v1389 = vld [vmem:[%s1387 + $0x4] sm:$0xf]
        %v1390 = vld [vmem:[%s1387 + $0x8] sm:$0xf]
        %v1391 = vld [vmem:[%s1387 + $0xc] sm:$0xf]
        %s1392 = scalar_lea.vmem %s296, 32
        %v1393 = vld [vmem:[%s1392] sm:$0xf]
        %v1394 = vld [vmem:[%s1392 + $0x4] sm:$0xf]
        %v1395 = vld [vmem:[%s1392 + $0x8] sm:$0xf]
        %v1396 = vld [vmem:[%s1392 + $0xc] sm:$0xf]
        %v1402 = vunpack.c.l.s4 1966171168
        %v1403 = vunpack.c.0.s8 %v1402
        %v1404 = vlaneseq
        %v1405 = vshrl.u32 %v1404, 7
        %v1406 = vsub.s32 %v1403, %v1405
        %v1407 = vrot.slane %v1388, %v1406
        %v1408 = vcombine.high %v1407, %v1407
        %v1410 = vunpack.c.l.s4 1966171168
        %v1411 = vunpack.c.0.s8 %v1410
        %v1412 = vlaneseq
        %v1413 = vshrl.u32 %v1412, 7
        %v1414 = vsub.s32 %v1411, %v1413
        %v1415 = vrot.slane %v1407, %v1414
        %v1417 = vunpack.c.l.s4 1966171168
        %v1418 = vunpack.c.0.s8 %v1417
        %v1419 = vlaneseq
        %v1420 = vshrl.u32 %v1419, 7
        %v1421 = vsub.s32 %v1418, %v1420
        %v1422 = vrot.slane %v1408, %v1421
        %v1423 = vcombine.high %v1415, %v1415
        %v1424 = vcombine.high %v1422, %v1422
        %v1426 = vunpack.c.l.s4 1966171168
        %v1427 = vunpack.c.0.s8 %v1426
        %v1428 = vlaneseq
        %v1429 = vshrl.u32 %v1428, 7
        %v1430 = vsub.s32 %v1427, %v1429
        %v1431 = vrot.slane %v1389, %v1430
        %v1432 = vcombine.high %v1431, %v1431
        %v1434 = vunpack.c.l.s4 1966171168
        %v1435 = vunpack.c.0.s8 %v1434
        %v1436 = vlaneseq
        %v1437 = vshrl.u32 %v1436, 7
        %v1438 = vsub.s32 %v1435, %v1437
        %v1439 = vrot.slane %v1431, %v1438
        %v1441 = vunpack.c.l.s4 1966171168
        %v1442 = vunpack.c.0.s8 %v1441
        %v1443 = vlaneseq
        %v1444 = vshrl.u32 %v1443, 7
        %v1445 = vsub.s32 %v1442, %v1444
        %v1446 = vrot.slane %v1432, %v1445
        %v1447 = vcombine.high %v1439, %v1439
        %v1448 = vcombine.high %v1446, %v1446
        %v1450 = vunpack.c.l.s4 1966171168
        %v1451 = vunpack.c.0.s8 %v1450
        %v1452 = vlaneseq
        %v1453 = vshrl.u32 %v1452, 7
        %v1454 = vsub.s32 %v1451, %v1453
        %v1455 = vrot.slane %v1390, %v1454
        %v1456 = vcombine.high %v1455, %v1455
        %v1458 = vunpack.c.l.s4 1966171168
        %v1459 = vunpack.c.0.s8 %v1458
        %v1460 = vlaneseq
        %v1461 = vshrl.u32 %v1460, 7
        %v1462 = vsub.s32 %v1459, %v1461
        %v1463 = vrot.slane %v1455, %v1462
        %v1465 = vunpack.c.l.s4 1966171168
        %v1466 = vunpack.c.0.s8 %v1465
        %v1467 = vlaneseq
        %v1468 = vshrl.u32 %v1467, 7
        %v1469 = vsub.s32 %v1466, %v1468
        %v1470 = vrot.slane %v1456, %v1469
        %v1471 = vcombine.high %v1463, %v1463
        %v1472 = vcombine.high %v1470, %v1470
        %v1474 = vunpack.c.l.s4 1966171168
        %v1475 = vunpack.c.0.s8 %v1474
        %v1476 = vlaneseq
        %v1477 = vshrl.u32 %v1476, 7
        %v1478 = vsub.s32 %v1475, %v1477
        %v1479 = vrot.slane %v1391, %v1478
        %v1480 = vcombine.high %v1479, %v1479
        %v1482 = vunpack.c.l.s4 1966171168
        %v1483 = vunpack.c.0.s8 %v1482
        %v1484 = vlaneseq
        %v1485 = vshrl.u32 %v1484, 7
        %v1486 = vsub.s32 %v1483, %v1485
        %v1487 = vrot.slane %v1479, %v1486
        %v1489 = vunpack.c.l.s4 1966171168
        %v1490 = vunpack.c.0.s8 %v1489
        %v1491 = vlaneseq
        %v1492 = vshrl.u32 %v1491, 7
        %v1493 = vsub.s32 %v1490, %v1492
        %v1494 = vrot.slane %v1480, %v1493
        %v1495 = vcombine.high %v1487, %v1487
        %v1496 = vcombine.high %v1494, %v1494
        %v1497 = vlaneseq
        %v1498 = vshrl.u32 %v1497, 7
        %v1499 = vsub.s32 0, %v1498
        %v1500 = vrot.slane %v1415, %v1499
        %v1501 = vlaneseq
        %v1502 = vshrl.u32 %v1501, 7
        %v1503 = vsub.s32 0, %v1502
        %v1504 = vrot.slane %v1422, %v1503
        %v1505 = vlaneseq
        %v1506 = vshrl.u32 %v1505, 7
        %v1507 = vsub.s32 0, %v1506
        %v1508 = vrot.slane %v1423, %v1507
        %v1509 = vlaneseq
        %v1510 = vshrl.u32 %v1509, 7
        %v1511 = vsub.s32 0, %v1510
        %v1512 = vrot.slane %v1424, %v1511
        %v1513 = vlaneseq
        %v1514 = vshrl.u32 %v1513, 7
        %v1515 = vsub.s32 0, %v1514
        %v1516 = vrot.slane %v1439, %v1515
        %v1517 = vlaneseq
        %v1518 = vshrl.u32 %v1517, 7
        %v1519 = vsub.s32 0, %v1518
        %v1520 = vrot.slane %v1446, %v1519
        %v1521 = vlaneseq
        %v1522 = vshrl.u32 %v1521, 7
        %v1523 = vsub.s32 0, %v1522
        %v1524 = vrot.slane %v1447, %v1523
        %v1525 = vlaneseq
        %v1526 = vshrl.u32 %v1525, 7
        %v1527 = vsub.s32 0, %v1526
        %v1528 = vrot.slane %v1448, %v1527
        %v1529 = vlaneseq
        %v1530 = vshrl.u32 %v1529, 7
        %v1531 = vsub.s32 0, %v1530
        %v1532 = vrot.slane %v1463, %v1531
        %v1533 = vlaneseq
        %v1534 = vshrl.u32 %v1533, 7
        %v1535 = vsub.s32 0, %v1534
        %v1536 = vrot.slane %v1470, %v1535
        %v1537 = vlaneseq
        %v1538 = vshrl.u32 %v1537, 7
        %v1539 = vsub.s32 0, %v1538
        %v1540 = vrot.slane %v1471, %v1539
        %v1541 = vlaneseq
        %v1542 = vshrl.u32 %v1541, 7
        %v1543 = vsub.s32 0, %v1542
        %v1544 = vrot.slane %v1472, %v1543
        %v1545 = vlaneseq
        %v1546 = vshrl.u32 %v1545, 7
        %v1547 = vsub.s32 0, %v1546
        %v1548 = vrot.slane %v1487, %v1547
        %v1549 = vlaneseq
        %v1550 = vshrl.u32 %v1549, 7
        %v1551 = vsub.s32 0, %v1550
        %v1552 = vrot.slane %v1494, %v1551
        %v1553 = vlaneseq
        %v1554 = vshrl.u32 %v1553, 7
        %v1555 = vsub.s32 0, %v1554
        %v1556 = vrot.slane %v1495, %v1555
        %v1557 = vlaneseq
        %v1558 = vshrl.u32 %v1557, 7
        %v1559 = vsub.s32 0, %v1558
        %v1560 = vrot.slane %v1496, %v1559
        %v1577 = vmul.f32 %v1500, %v1383
        %v1578 = vmul.f32 %v1504, %v1383
        %v1579 = vmul.f32 %v1508, %v1383
        %v1580 = vmul.f32 %v1512, %v1383
        %v1581 = vmul.f32 %v1516, %v1384
        %v1582 = vmul.f32 %v1520, %v1384
        %v1583 = vmul.f32 %v1524, %v1384
        %v1584 = vmul.f32 %v1528, %v1384
        %v1585 = vmul.f32 %v1532, %v1385
        %v1586 = vmul.f32 %v1536, %v1385
        %v1587 = vmul.f32 %v1540, %v1385
        %v1588 = vmul.f32 %v1544, %v1385
        %v1589 = vmul.f32 %v1548, %v1386
        %v1590 = vmul.f32 %v1552, %v1386
        %v1591 = vmul.f32 %v1556, %v1386
        %v1592 = vmul.f32 %v1560, %v1386
        %v1593 = vsel %vm517, %v1577, 0.0
        %v1594 = vsel %vm517, %v1581, 0.0
        %v1595 = vadd.f32 %v1593, %v1594
        %v1596 = vsel %vm517, %v1585, 0.0
        %v1597 = vadd.f32 %v1595, %v1596
        %v1598 = vsel %vm517, %v1589, 0.0
        %v1599 = vadd.f32 %v1597, %v1598
        %v1600 = vsel %vm517, %v1578, 0.0
        %v1601 = vsel %vm517, %v1582, 0.0
        %v1602 = vadd.f32 %v1600, %v1601
        %v1603 = vsel %vm517, %v1586, 0.0
        %v1604 = vadd.f32 %v1602, %v1603
        %v1605 = vsel %vm517, %v1590, 0.0
        %v1606 = vadd.f32 %v1604, %v1605
        %v1607 = vsel %vm517, %v1579, 0.0
        %v1608 = vsel %vm517, %v1583, 0.0
        %v1609 = vadd.f32 %v1607, %v1608
        %v1610 = vsel %vm517, %v1587, 0.0
        %v1611 = vadd.f32 %v1609, %v1610
        %v1612 = vsel %vm517, %v1591, 0.0
        %v1613 = vadd.f32 %v1611, %v1612
        %v1614 = vsel %vm517, %v1580, 0.0
        %v1615 = vsel %vm517, %v1584, 0.0
        %v1616 = vadd.f32 %v1614, %v1615
        %v1617 = vsel %vm517, %v1588, 0.0
        %v1618 = vadd.f32 %v1616, %v1617
        %v1619 = vsel %vm517, %v1592, 0.0
        %v1620 = vadd.f32 %v1618, %v1619
        %v1621 = vsel %vm517, %v1599, -inf
        %v1622 = vsel %vm517, %v1606, -inf
        %v1623 = vsel %vm517, %v1613, -inf
        %v1624 = vsel %vm517, %v1620, -inf
        %v1625 = vmax.f32 %v1621, %v1622
        %v1626 = vmax.f32 %v1623, %v1624
        %v1627 = vmax.f32 %v1625, %v1626
        %v1628 = vsub.f32 %v1599, %v1627
        %v1629 = vsub.f32 %v1606, %v1627
        %v1630 = vsub.f32 %v1613, %v1627
        %v1631 = vsub.f32 %v1620, %v1627
        %v1632 = vmul.f32 %v1628, 1.442695
        %v1633 = vpow.pop %v1632
        %v1634 = vmul.f32 %v1629, 1.442695
        %v1635 = vpow.pop %v1634
        %v1636 = vmul.f32 %v1630, 1.442695
        %v1637 = vpow.pop %v1636
        %v1638 = vmul.f32 %v1631, 1.442695
        %v1639 = vpow.pop %v1638
        %v1640 = vsel %vm517, %v1633, 0.0
        %v1641 = vsel %vm517, %v1635, 0.0
        %v1642 = vadd.f32 %v1640, %v1641
        %v1643 = vsel %vm517, %v1637, 0.0
        %v1644 = vadd.f32 %v1642, %v1643
        %v1645 = vsel %vm517, %v1639, 0.0
        %v1646 = vadd.f32 %v1644, %v1645
        %v1652 = vunpack.c.l.s4 1966171168
        %v1653 = vunpack.c.0.s8 %v1652
        %v1654 = vlaneseq
        %v1655 = vshrl.u32 %v1654, 7
        %v1656 = vsub.s32 %v1653, %v1655
        %v1657 = vrot.slane %v1393, %v1656
        %v1658 = vcombine.high %v1657, %v1657
        %v1660 = vunpack.c.l.s4 1966171168
        %v1661 = vunpack.c.0.s8 %v1660
        %v1662 = vlaneseq
        %v1663 = vshrl.u32 %v1662, 7
        %v1664 = vsub.s32 %v1661, %v1663
        %v1665 = vrot.slane %v1657, %v1664
        %v1667 = vunpack.c.l.s4 1966171168
        %v1668 = vunpack.c.0.s8 %v1667
        %v1669 = vlaneseq
        %v1670 = vshrl.u32 %v1669, 7
        %v1671 = vsub.s32 %v1668, %v1670
        %v1672 = vrot.slane %v1658, %v1671
        %v1673 = vcombine.high %v1665, %v1665
        %v1674 = vcombine.high %v1672, %v1672
        %v1676 = vunpack.c.l.s4 1966171168
        %v1677 = vunpack.c.0.s8 %v1676
        %v1678 = vlaneseq
        %v1679 = vshrl.u32 %v1678, 7
        %v1680 = vsub.s32 %v1677, %v1679
        %v1681 = vrot.slane %v1394, %v1680
        %v1682 = vcombine.high %v1681, %v1681
        %v1684 = vunpack.c.l.s4 1966171168
        %v1685 = vunpack.c.0.s8 %v1684
        %v1686 = vlaneseq
        %v1687 = vshrl.u32 %v1686, 7
        %v1688 = vsub.s32 %v1685, %v1687
        %v1689 = vrot.slane %v1681, %v1688
        %v1691 = vunpack.c.l.s4 1966171168
        %v1692 = vunpack.c.0.s8 %v1691
        %v1693 = vlaneseq
        %v1694 = vshrl.u32 %v1693, 7
        %v1695 = vsub.s32 %v1692, %v1694
        %v1696 = vrot.slane %v1682, %v1695
        %v1697 = vcombine.high %v1689, %v1689
        %v1698 = vcombine.high %v1696, %v1696
        %v1700 = vunpack.c.l.s4 1966171168
        %v1701 = vunpack.c.0.s8 %v1700
        %v1702 = vlaneseq
        %v1703 = vshrl.u32 %v1702, 7
        %v1704 = vsub.s32 %v1701, %v1703
        %v1705 = vrot.slane %v1395, %v1704
        %v1706 = vcombine.high %v1705, %v1705
        %v1708 = vunpack.c.l.s4 1966171168
        %v1709 = vunpack.c.0.s8 %v1708
        %v1710 = vlaneseq
        %v1711 = vshrl.u32 %v1710, 7
        %v1712 = vsub.s32 %v1709, %v1711
        %v1713 = vrot.slane %v1705, %v1712
        %v1715 = vunpack.c.l.s4 1966171168
        %v1716 = vunpack.c.0.s8 %v1715
        %v1717 = vlaneseq
        %v1718 = vshrl.u32 %v1717, 7
        %v1719 = vsub.s32 %v1716, %v1718
        %v1720 = vrot.slane %v1706, %v1719
        %v1721 = vcombine.high %v1713, %v1713
        %v1722 = vcombine.high %v1720, %v1720
        %v1724 = vunpack.c.l.s4 1966171168
        %v1725 = vunpack.c.0.s8 %v1724
        %v1726 = vlaneseq
        %v1727 = vshrl.u32 %v1726, 7
        %v1728 = vsub.s32 %v1725, %v1727
        %v1729 = vrot.slane %v1396, %v1728
        %v1730 = vcombine.high %v1729, %v1729
        %v1732 = vunpack.c.l.s4 1966171168
        %v1733 = vunpack.c.0.s8 %v1732
        %v1734 = vlaneseq
        %v1735 = vshrl.u32 %v1734, 7
        %v1736 = vsub.s32 %v1733, %v1735
        %v1737 = vrot.slane %v1729, %v1736
        %v1739 = vunpack.c.l.s4 1966171168
        %v1740 = vunpack.c.0.s8 %v1739
        %v1741 = vlaneseq
        %v1742 = vshrl.u32 %v1741, 7
        %v1743 = vsub.s32 %v1740, %v1742
        %v1744 = vrot.slane %v1730, %v1743
        %v1745 = vcombine.high %v1737, %v1737
        %v1746 = vcombine.high %v1744, %v1744
        %v1747 = vlaneseq
        %v1748 = vshrl.u32 %v1747, 7
        %v1749 = vsub.s32 0, %v1748
        %v1750 = vrot.slane %v1665, %v1749
        %v1751 = vlaneseq
        %v1752 = vshrl.u32 %v1751, 7
        %v1753 = vsub.s32 0, %v1752
        %v1754 = vrot.slane %v1672, %v1753
        %v1755 = vlaneseq
        %v1756 = vshrl.u32 %v1755, 7
        %v1757 = vsub.s32 0, %v1756
        %v1758 = vrot.slane %v1673, %v1757
        %v1759 = vlaneseq
        %v1760 = vshrl.u32 %v1759, 7
        %v1761 = vsub.s32 0, %v1760
        %v1762 = vrot.slane %v1674, %v1761
        %v1763 = vlaneseq
        %v1764 = vshrl.u32 %v1763, 7
        %v1765 = vsub.s32 0, %v1764
        %v1766 = vrot.slane %v1689, %v1765
        %v1767 = vlaneseq
        %v1768 = vshrl.u32 %v1767, 7
        %v1769 = vsub.s32 0, %v1768
        %v1770 = vrot.slane %v1696, %v1769
        %v1771 = vlaneseq
        %v1772 = vshrl.u32 %v1771, 7
        %v1773 = vsub.s32 0, %v1772
        %v1774 = vrot.slane %v1697, %v1773
        %v1775 = vlaneseq
        %v1776 = vshrl.u32 %v1775, 7
        %v1777 = vsub.s32 0, %v1776
        %v1778 = vrot.slane %v1698, %v1777
        %v1779 = vlaneseq
        %v1780 = vshrl.u32 %v1779, 7
        %v1781 = vsub.s32 0, %v1780
        %v1782 = vrot.slane %v1713, %v1781
        %v1783 = vlaneseq
        %v1784 = vshrl.u32 %v1783, 7
        %v1785 = vsub.s32 0, %v1784
        %v1786 = vrot.slane %v1720, %v1785
        %v1787 = vlaneseq
        %v1788 = vshrl.u32 %v1787, 7
        %v1789 = vsub.s32 0, %v1788
        %v1790 = vrot.slane %v1721, %v1789
        %v1791 = vlaneseq
        %v1792 = vshrl.u32 %v1791, 7
        %v1793 = vsub.s32 0, %v1792
        %v1794 = vrot.slane %v1722, %v1793
        %v1795 = vlaneseq
        %v1796 = vshrl.u32 %v1795, 7
        %v1797 = vsub.s32 0, %v1796
        %v1798 = vrot.slane %v1737, %v1797
        %v1799 = vlaneseq
        %v1800 = vshrl.u32 %v1799, 7
        %v1801 = vsub.s32 0, %v1800
        %v1802 = vrot.slane %v1744, %v1801
        %v1803 = vlaneseq
        %v1804 = vshrl.u32 %v1803, 7
        %v1805 = vsub.s32 0, %v1804
        %v1806 = vrot.slane %v1745, %v1805
        %v1807 = vlaneseq
        %v1808 = vshrl.u32 %v1807, 7
        %v1809 = vsub.s32 0, %v1808
        %v1810 = vrot.slane %v1746, %v1809
        %v1827 = vmul.f32 %v1633, %v1750
        %v1828 = vmul.f32 %v1635, %v1754
        %v1829 = vmul.f32 %v1637, %v1758
        %v1830 = vmul.f32 %v1639, %v1762
        %v1831 = vmul.f32 %v1633, %v1766
        %v1832 = vmul.f32 %v1635, %v1770
        %v1833 = vmul.f32 %v1637, %v1774
        %v1834 = vmul.f32 %v1639, %v1778
        %v1835 = vmul.f32 %v1633, %v1782
        %v1836 = vmul.f32 %v1635, %v1786
        %v1837 = vmul.f32 %v1637, %v1790
        %v1838 = vmul.f32 %v1639, %v1794
        %v1839 = vmul.f32 %v1633, %v1798
        %v1840 = vmul.f32 %v1635, %v1802
        %v1841 = vmul.f32 %v1637, %v1806
        %v1842 = vmul.f32 %v1639, %v1810
        %v1843 = vsel %vm517, %v1827, 0.0
        %v1844 = vsel %vm517, %v1828, 0.0
        %v1845 = vadd.f32 %v1843, %v1844
        %v1846 = vsel %vm517, %v1829, 0.0
        %v1847 = vadd.f32 %v1845, %v1846
        %v1848 = vsel %vm517, %v1830, 0.0
        %v1849 = vadd.f32 %v1847, %v1848
        %v1850 = vsel %vm517, %v1831, 0.0
        %v1851 = vsel %vm517, %v1832, 0.0
        %v1852 = vadd.f32 %v1850, %v1851
        %v1853 = vsel %vm517, %v1833, 0.0
        %v1854 = vadd.f32 %v1852, %v1853
        %v1855 = vsel %vm517, %v1834, 0.0
        %v1856 = vadd.f32 %v1854, %v1855
        %v1857 = vsel %vm517, %v1835, 0.0
        %v1858 = vsel %vm517, %v1836, 0.0
        %v1859 = vadd.f32 %v1857, %v1858
        %v1860 = vsel %vm517, %v1837, 0.0
        %v1861 = vadd.f32 %v1859, %v1860
        %v1862 = vsel %vm517, %v1838, 0.0
        %v1863 = vadd.f32 %v1861, %v1862
        %v1864 = vsel %vm517, %v1839, 0.0
        %v1865 = vsel %vm517, %v1840, 0.0
        %v1866 = vadd.f32 %v1864, %v1865
        %v1867 = vsel %vm517, %v1841, 0.0
        %v1868 = vadd.f32 %v1866, %v1867
        %v1869 = vsel %vm517, %v1842, 0.0
        %v1870 = vadd.f32 %v1868, %v1869
        %v1871 = vrcp.pop %v1646
        %v1872 = vmul.f32 %v1849, %v1871
        %v1873 = vmul.f32 %v1856, %v1871
        %v1874 = vmul.f32 %v1863, %v1871
        %v1875 = vmul.f32 %v1870, %v1871
        %s1876 = sld [smem:[#allocation2 + $0x10]]
        %v1877 = vstv %s1876
        %v1878 = vmul.f32 %v1872, %v1877
        %s1879 = scalar_lea.vmem %s304, 64
        %1880 = vst [vmem:[%s1879] sm:$0xf] %v1878
        %s1881 = sld [smem:[#allocation2 + $0x11]]
        %v1882 = vstv %s1881
        %v1883 = vmul.f32 %v1872, %v1882
        %s1884 = scalar_lea.vmem %s304, 68
        %1885 = vst [vmem:[%s1884] sm:$0xf] %v1883
        %s1886 = sld [smem:[#allocation2 + $0x12]]
        %v1887 = vstv %s1886
        %v1888 = vmul.f32 %v1873, %v1887
        %s1889 = scalar_lea.vmem %s304, 72
        %1890 = vst [vmem:[%s1889] sm:$0xf] %v1888
        %s1891 = sld [smem:[#allocation2 + $0x13]]
        %v1892 = vstv %s1891
        %v1893 = vmul.f32 %v1873, %v1892
        %s1894 = scalar_lea.vmem %s304, 76
        %1895 = vst [vmem:[%s1894] sm:$0xf] %v1893
        %s1896 = sld [smem:[#allocation2 + $0x14]]
        %v1897 = vstv %s1896
        %v1898 = vmul.f32 %v1874, %v1897
        %s1899 = scalar_lea.vmem %s304, 80
        %1900 = vst [vmem:[%s1899] sm:$0xf] %v1898
        %s1901 = sld [smem:[#allocation2 + $0x15]]
        %v1902 = vstv %s1901
        %v1903 = vmul.f32 %v1874, %v1902
        %s1904 = scalar_lea.vmem %s304, 84
        %1905 = vst [vmem:[%s1904] sm:$0xf] %v1903
        %s1906 = sld [smem:[#allocation2 + $0x16]]
        %v1907 = vstv %s1906
        %v1908 = vmul.f32 %v1875, %v1907
        %s1909 = scalar_lea.vmem %s304, 88
        %1910 = vst [vmem:[%s1909] sm:$0xf] %v1908
        %s1911 = sld [smem:[#allocation2 + $0x17]]
        %v1912 = vstv %s1911
        %v1913 = vmul.f32 %v1875, %v1912
        %s1914 = scalar_lea.vmem %s304, 92
        %1915 = vst [vmem:[%s1914] sm:$0xf] %v1913
        %s1916 = scalar_lea.vmem %s280, 48
        %v1917 = vld [vmem:[%s1916] sm:$0xf]
        %v1918 = vld [vmem:[%s1916 + $0x4] sm:$0xf]
        %v1919 = vld [vmem:[%s1916 + $0x8] sm:$0xf]
        %v1920 = vld [vmem:[%s1916 + $0xc] sm:$0xf]
        %v1921 = vmul.f32 %v1917, 0.35355338
        %v1922 = vmul.f32 %v1918, 0.35355338
        %v1923 = vmul.f32 %v1919, 0.35355338
        %v1924 = vmul.f32 %v1920, 0.35355338
        %s1925 = scalar_lea.vmem %s288, 48
        %v1926 = vld [vmem:[%s1925] sm:$0xf]
        %v1927 = vld [vmem:[%s1925 + $0x4] sm:$0xf]
        %v1928 = vld [vmem:[%s1925 + $0x8] sm:$0xf]
        %v1929 = vld [vmem:[%s1925 + $0xc] sm:$0xf]
        %s1930 = scalar_lea.vmem %s296, 48
        %v1931 = vld [vmem:[%s1930] sm:$0xf]
        %v1932 = vld [vmem:[%s1930 + $0x4] sm:$0xf]
        %v1933 = vld [vmem:[%s1930 + $0x8] sm:$0xf]
        %v1934 = vld [vmem:[%s1930 + $0xc] sm:$0xf]
        %v1940 = vunpack.c.l.s4 1966171168
        %v1941 = vunpack.c.0.s8 %v1940
        %v1942 = vlaneseq
        %v1943 = vshrl.u32 %v1942, 7
        %v1944 = vsub.s32 %v1941, %v1943
        %v1945 = vrot.slane %v1926, %v1944
        %v1946 = vcombine.high %v1945, %v1945
        %v1948 = vunpack.c.l.s4 1966171168
        %v1949 = vunpack.c.0.s8 %v1948
        %v1950 = vlaneseq
        %v1951 = vshrl.u32 %v1950, 7
        %v1952 = vsub.s32 %v1949, %v1951
        %v1953 = vrot.slane %v1945, %v1952
        %v1955 = vunpack.c.l.s4 1966171168
        %v1956 = vunpack.c.0.s8 %v1955
        %v1957 = vlaneseq
        %v1958 = vshrl.u32 %v1957, 7
        %v1959 = vsub.s32 %v1956, %v1958
        %v1960 = vrot.slane %v1946, %v1959
        %v1961 = vcombine.high %v1953, %v1953
        %v1962 = vcombine.high %v1960, %v1960
        %v1964 = vunpack.c.l.s4 1966171168
        %v1965 = vunpack.c.0.s8 %v1964
        %v1966 = vlaneseq
        %v1967 = vshrl.u32 %v1966, 7
        %v1968 = vsub.s32 %v1965, %v1967
        %v1969 = vrot.slane %v1927, %v1968
        %v1970 = vcombine.high %v1969, %v1969
        %v1972 = vunpack.c.l.s4 1966171168
        %v1973 = vunpack.c.0.s8 %v1972
        %v1974 = vlaneseq
        %v1975 = vshrl.u32 %v1974, 7
        %v1976 = vsub.s32 %v1973, %v1975
        %v1977 = vrot.slane %v1969, %v1976
        %v1979 = vunpack.c.l.s4 1966171168
        %v1980 = vunpack.c.0.s8 %v1979
        %v1981 = vlaneseq
        %v1982 = vshrl.u32 %v1981, 7
        %v1983 = vsub.s32 %v1980, %v1982
        %v1984 = vrot.slane %v1970, %v1983
        %v1985 = vcombine.high %v1977, %v1977
        %v1986 = vcombine.high %v1984, %v1984
        %v1988 = vunpack.c.l.s4 1966171168
        %v1989 = vunpack.c.0.s8 %v1988
        %v1990 = vlaneseq
        %v1991 = vshrl.u32 %v1990, 7
        %v1992 = vsub.s32 %v1989, %v1991
        %v1993 = vrot.slane %v1928, %v1992
        %v1994 = vcombine.high %v1993, %v1993
        %v1996 = vunpack.c.l.s4 1966171168
        %v1997 = vunpack.c.0.s8 %v1996
        %v1998 = vlaneseq
        %v1999 = vshrl.u32 %v1998, 7
        %v2000 = vsub.s32 %v1997, %v1999
        %v2001 = vrot.slane %v1993, %v2000
        %v2003 = vunpack.c.l.s4 1966171168
        %v2004 = vunpack.c.0.s8 %v2003
        %v2005 = vlaneseq
        %v2006 = vshrl.u32 %v2005, 7
        %v2007 = vsub.s32 %v2004, %v2006
        %v2008 = vrot.slane %v1994, %v2007
        %v2009 = vcombine.high %v2001, %v2001
        %v2010 = vcombine.high %v2008, %v2008
        %v2012 = vunpack.c.l.s4 1966171168
        %v2013 = vunpack.c.0.s8 %v2012
        %v2014 = vlaneseq
        %v2015 = vshrl.u32 %v2014, 7
        %v2016 = vsub.s32 %v2013, %v2015
        %v2017 = vrot.slane %v1929, %v2016
        %v2018 = vcombine.high %v2017, %v2017
        %v2020 = vunpack.c.l.s4 1966171168
        %v2021 = vunpack.c.0.s8 %v2020
        %v2022 = vlaneseq
        %v2023 = vshrl.u32 %v2022, 7
        %v2024 = vsub.s32 %v2021, %v2023
        %v2025 = vrot.slane %v2017, %v2024
        %v2027 = vunpack.c.l.s4 1966171168
        %v2028 = vunpack.c.0.s8 %v2027
        %v2029 = vlaneseq
        %v2030 = vshrl.u32 %v2029, 7
        %v2031 = vsub.s32 %v2028, %v2030
        %v2032 = vrot.slane %v2018, %v2031
        %v2033 = vcombine.high %v2025, %v2025
        %v2034 = vcombine.high %v2032, %v2032
        %v2035 = vlaneseq
        %v2036 = vshrl.u32 %v2035, 7
        %v2037 = vsub.s32 0, %v2036
        %v2038 = vrot.slane %v1953, %v2037
        %v2039 = vlaneseq
        %v2040 = vshrl.u32 %v2039, 7
        %v2041 = vsub.s32 0, %v2040
        %v2042 = vrot.slane %v1960, %v2041
        %v2043 = vlaneseq
        %v2044 = vshrl.u32 %v2043, 7
        %v2045 = vsub.s32 0, %v2044
        %v2046 = vrot.slane %v1961, %v2045
        %v2047 = vlaneseq
        %v2048 = vshrl.u32 %v2047, 7
        %v2049 = vsub.s32 0, %v2048
        %v2050 = vrot.slane %v1962, %v2049
        %v2051 = vlaneseq
        %v2052 = vshrl.u32 %v2051, 7
        %v2053 = vsub.s32 0, %v2052
        %v2054 = vrot.slane %v1977, %v2053
        %v2055 = vlaneseq
        %v2056 = vshrl.u32 %v2055, 7
        %v2057 = vsub.s32 0, %v2056
        %v2058 = vrot.slane %v1984, %v2057
        %v2059 = vlaneseq
        %v2060 = vshrl.u32 %v2059, 7
        %v2061 = vsub.s32 0, %v2060
        %v2062 = vrot.slane %v1985, %v2061
        %v2063 = vlaneseq
        %v2064 = vshrl.u32 %v2063, 7
        %v2065 = vsub.s32 0, %v2064
        %v2066 = vrot.slane %v1986, %v2065
        %v2067 = vlaneseq
        %v2068 = vshrl.u32 %v2067, 7
        %v2069 = vsub.s32 0, %v2068
        %v2070 = vrot.slane %v2001, %v2069
        %v2071 = vlaneseq
        %v2072 = vshrl.u32 %v2071, 7
        %v2073 = vsub.s32 0, %v2072
        %v2074 = vrot.slane %v2008, %v2073
        %v2075 = vlaneseq
        %v2076 = vshrl.u32 %v2075, 7
        %v2077 = vsub.s32 0, %v2076
        %v2078 = vrot.slane %v2009, %v2077
        %v2079 = vlaneseq
        %v2080 = vshrl.u32 %v2079, 7
        %v2081 = vsub.s32 0, %v2080
        %v2082 = vrot.slane %v2010, %v2081
        %v2083 = vlaneseq
        %v2084 = vshrl.u32 %v2083, 7
        %v2085 = vsub.s32 0, %v2084
        %v2086 = vrot.slane %v2025, %v2085
        %v2087 = vlaneseq
        %v2088 = vshrl.u32 %v2087, 7
        %v2089 = vsub.s32 0, %v2088
        %v2090 = vrot.slane %v2032, %v2089
        %v2091 = vlaneseq
        %v2092 = vshrl.u32 %v2091, 7
        %v2093 = vsub.s32 0, %v2092
        %v2094 = vrot.slane %v2033, %v2093
        %v2095 = vlaneseq
        %v2096 = vshrl.u32 %v2095, 7
        %v2097 = vsub.s32 0, %v2096
        %v2098 = vrot.slane %v2034, %v2097
        %v2115 = vmul.f32 %v2038, %v1921
        %v2116 = vmul.f32 %v2042, %v1921
        %v2117 = vmul.f32 %v2046, %v1921
        %v2118 = vmul.f32 %v2050, %v1921
        %v2119 = vmul.f32 %v2054, %v1922
        %v2120 = vmul.f32 %v2058, %v1922
        %v2121 = vmul.f32 %v2062, %v1922
        %v2122 = vmul.f32 %v2066, %v1922
        %v2123 = vmul.f32 %v2070, %v1923
        %v2124 = vmul.f32 %v2074, %v1923
        %v2125 = vmul.f32 %v2078, %v1923
        %v2126 = vmul.f32 %v2082, %v1923
        %v2127 = vmul.f32 %v2086, %v1924
        %v2128 = vmul.f32 %v2090, %v1924
        %v2129 = vmul.f32 %v2094, %v1924
        %v2130 = vmul.f32 %v2098, %v1924
        %v2131 = vsel %vm517, %v2115, 0.0
        %v2132 = vsel %vm517, %v2119, 0.0
        %v2133 = vadd.f32 %v2131, %v2132
        %v2134 = vsel %vm517, %v2123, 0.0
        %v2135 = vadd.f32 %v2133, %v2134
        %v2136 = vsel %vm517, %v2127, 0.0
        %v2137 = vadd.f32 %v2135, %v2136
        %v2138 = vsel %vm517, %v2116, 0.0
        %v2139 = vsel %vm517, %v2120, 0.0
        %v2140 = vadd.f32 %v2138, %v2139
        %v2141 = vsel %vm517, %v2124, 0.0
        %v2142 = vadd.f32 %v2140, %v2141
        %v2143 = vsel %vm517, %v2128, 0.0
        %v2144 = vadd.f32 %v2142, %v2143
        %v2145 = vsel %vm517, %v2117, 0.0
        %v2146 = vsel %vm517, %v2121, 0.0
        %v2147 = vadd.f32 %v2145, %v2146
        %v2148 = vsel %vm517, %v2125, 0.0
        %v2149 = vadd.f32 %v2147, %v2148
        %v2150 = vsel %vm517, %v2129, 0.0
        %v2151 = vadd.f32 %v2149, %v2150
        %v2152 = vsel %vm517, %v2118, 0.0
        %v2153 = vsel %vm517, %v2122, 0.0
        %v2154 = vadd.f32 %v2152, %v2153
        %v2155 = vsel %vm517, %v2126, 0.0
        %v2156 = vadd.f32 %v2154, %v2155
        %v2157 = vsel %vm517, %v2130, 0.0
        %v2158 = vadd.f32 %v2156, %v2157
        %v2159 = vsel %vm517, %v2137, -inf
        %v2160 = vsel %vm517, %v2144, -inf
        %v2161 = vsel %vm517, %v2151, -inf
        %v2162 = vsel %vm517, %v2158, -inf
        %v2163 = vmax.f32 %v2159, %v2160
        %v2164 = vmax.f32 %v2161, %v2162
        %v2165 = vmax.f32 %v2163, %v2164
        %v2166 = vsub.f32 %v2137, %v2165
        %v2167 = vsub.f32 %v2144, %v2165
        %v2168 = vsub.f32 %v2151, %v2165
        %v2169 = vsub.f32 %v2158, %v2165
        %v2170 = vmul.f32 %v2166, 1.442695
        %v2171 = vpow.pop %v2170
        %v2172 = vmul.f32 %v2167, 1.442695
        %v2173 = vpow.pop %v2172
        %v2174 = vmul.f32 %v2168, 1.442695
        %v2175 = vpow.pop %v2174
        %v2176 = vmul.f32 %v2169, 1.442695
        %v2177 = vpow.pop %v2176
        %v2178 = vsel %vm517, %v2171, 0.0
        %v2179 = vsel %vm517, %v2173, 0.0
        %v2180 = vadd.f32 %v2178, %v2179
        %v2181 = vsel %vm517, %v2175, 0.0
        %v2182 = vadd.f32 %v2180, %v2181
        %v2183 = vsel %vm517, %v2177, 0.0
        %v2184 = vadd.f32 %v2182, %v2183
        %v2190 = vunpack.c.l.s4 1966171168
        %v2191 = vunpack.c.0.s8 %v2190
        %v2192 = vlaneseq
        %v2193 = vshrl.u32 %v2192, 7
        %v2194 = vsub.s32 %v2191, %v2193
        %v2195 = vrot.slane %v1931, %v2194
        %v2196 = vcombine.high %v2195, %v2195
        %v2198 = vunpack.c.l.s4 1966171168
        %v2199 = vunpack.c.0.s8 %v2198
        %v2200 = vlaneseq
        %v2201 = vshrl.u32 %v2200, 7
        %v2202 = vsub.s32 %v2199, %v2201
        %v2203 = vrot.slane %v2195, %v2202
        %v2205 = vunpack.c.l.s4 1966171168
        %v2206 = vunpack.c.0.s8 %v2205
        %v2207 = vlaneseq
        %v2208 = vshrl.u32 %v2207, 7
        %v2209 = vsub.s32 %v2206, %v2208
        %v2210 = vrot.slane %v2196, %v2209
        %v2211 = vcombine.high %v2203, %v2203
        %v2212 = vcombine.high %v2210, %v2210
        %v2214 = vunpack.c.l.s4 1966171168
        %v2215 = vunpack.c.0.s8 %v2214
        %v2216 = vlaneseq
        %v2217 = vshrl.u32 %v2216, 7
        %v2218 = vsub.s32 %v2215, %v2217
        %v2219 = vrot.slane %v1932, %v2218
        %v2220 = vcombine.high %v2219, %v2219
        %v2222 = vunpack.c.l.s4 1966171168
        %v2223 = vunpack.c.0.s8 %v2222
        %v2224 = vlaneseq
        %v2225 = vshrl.u32 %v2224, 7
        %v2226 = vsub.s32 %v2223, %v2225
        %v2227 = vrot.slane %v2219, %v2226
        %v2229 = vunpack.c.l.s4 1966171168
        %v2230 = vunpack.c.0.s8 %v2229
        %v2231 = vlaneseq
        %v2232 = vshrl.u32 %v2231, 7
        %v2233 = vsub.s32 %v2230, %v2232
        %v2234 = vrot.slane %v2220, %v2233
        %v2235 = vcombine.high %v2227, %v2227
        %v2236 = vcombine.high %v2234, %v2234
        %v2238 = vunpack.c.l.s4 1966171168
        %v2239 = vunpack.c.0.s8 %v2238
        %v2240 = vlaneseq
        %v2241 = vshrl.u32 %v2240, 7
        %v2242 = vsub.s32 %v2239, %v2241
        %v2243 = vrot.slane %v1933, %v2242
        %v2244 = vcombine.high %v2243, %v2243
        %v2246 = vunpack.c.l.s4 1966171168
        %v2247 = vunpack.c.0.s8 %v2246
        %v2248 = vlaneseq
        %v2249 = vshrl.u32 %v2248, 7
        %v2250 = vsub.s32 %v2247, %v2249
        %v2251 = vrot.slane %v2243, %v2250
        %v2253 = vunpack.c.l.s4 1966171168
        %v2254 = vunpack.c.0.s8 %v2253
        %v2255 = vlaneseq
        %v2256 = vshrl.u32 %v2255, 7
        %v2257 = vsub.s32 %v2254, %v2256
        %v2258 = vrot.slane %v2244, %v2257
        %v2259 = vcombine.high %v2251, %v2251
        %v2260 = vcombine.high %v2258, %v2258
        %v2262 = vunpack.c.l.s4 1966171168
        %v2263 = vunpack.c.0.s8 %v2262
        %v2264 = vlaneseq
        %v2265 = vshrl.u32 %v2264, 7
        %v2266 = vsub.s32 %v2263, %v2265
        %v2267 = vrot.slane %v1934, %v2266
        %v2268 = vcombine.high %v2267, %v2267
        %v2270 = vunpack.c.l.s4 1966171168
        %v2271 = vunpack.c.0.s8 %v2270
        %v2272 = vlaneseq
        %v2273 = vshrl.u32 %v2272, 7
        %v2274 = vsub.s32 %v2271, %v2273
        %v2275 = vrot.slane %v2267, %v2274
        %v2277 = vunpack.c.l.s4 1966171168
        %v2278 = vunpack.c.0.s8 %v2277
        %v2279 = vlaneseq
        %v2280 = vshrl.u32 %v2279, 7
        %v2281 = vsub.s32 %v2278, %v2280
        %v2282 = vrot.slane %v2268, %v2281
        %v2283 = vcombine.high %v2275, %v2275
        %v2284 = vcombine.high %v2282, %v2282
        %v2285 = vlaneseq
        %v2286 = vshrl.u32 %v2285, 7
        %v2287 = vsub.s32 0, %v2286
        %v2288 = vrot.slane %v2203, %v2287
        %v2289 = vlaneseq
        %v2290 = vshrl.u32 %v2289, 7
        %v2291 = vsub.s32 0, %v2290
        %v2292 = vrot.slane %v2210, %v2291
        %v2293 = vlaneseq
        %v2294 = vshrl.u32 %v2293, 7
        %v2295 = vsub.s32 0, %v2294
        %v2296 = vrot.slane %v2211, %v2295
        %v2297 = vlaneseq
        %v2298 = vshrl.u32 %v2297, 7
        %v2299 = vsub.s32 0, %v2298
        %v2300 = vrot.slane %v2212, %v2299
        %v2301 = vlaneseq
        %v2302 = vshrl.u32 %v2301, 7
        %v2303 = vsub.s32 0, %v2302
        %v2304 = vrot.slane %v2227, %v2303
        %v2305 = vlaneseq
        %v2306 = vshrl.u32 %v2305, 7
        %v2307 = vsub.s32 0, %v2306
        %v2308 = vrot.slane %v2234, %v2307
        %v2309 = vlaneseq
        %v2310 = vshrl.u32 %v2309, 7
        %v2311 = vsub.s32 0, %v2310
        %v2312 = vrot.slane %v2235, %v2311
        %v2313 = vlaneseq
        %v2314 = vshrl.u32 %v2313, 7
        %v2315 = vsub.s32 0, %v2314
        %v2316 = vrot.slane %v2236, %v2315
        %v2317 = vlaneseq
        %v2318 = vshrl.u32 %v2317, 7
        %v2319 = vsub.s32 0, %v2318
        %v2320 = vrot.slane %v2251, %v2319
        %v2321 = vlaneseq
        %v2322 = vshrl.u32 %v2321, 7
        %v2323 = vsub.s32 0, %v2322
        %v2324 = vrot.slane %v2258, %v2323
        %v2325 = vlaneseq
        %v2326 = vshrl.u32 %v2325, 7
        %v2327 = vsub.s32 0, %v2326
        %v2328 = vrot.slane %v2259, %v2327
        %v2329 = vlaneseq
        %v2330 = vshrl.u32 %v2329, 7
        %v2331 = vsub.s32 0, %v2330
        %v2332 = vrot.slane %v2260, %v2331
        %v2333 = vlaneseq
        %v2334 = vshrl.u32 %v2333, 7
        %v2335 = vsub.s32 0, %v2334
        %v2336 = vrot.slane %v2275, %v2335
        %v2337 = vlaneseq
        %v2338 = vshrl.u32 %v2337, 7
        %v2339 = vsub.s32 0, %v2338
        %v2340 = vrot.slane %v2282, %v2339
        %v2341 = vlaneseq
        %v2342 = vshrl.u32 %v2341, 7
        %v2343 = vsub.s32 0, %v2342
        %v2344 = vrot.slane %v2283, %v2343
        %v2345 = vlaneseq
        %v2346 = vshrl.u32 %v2345, 7
        %v2347 = vsub.s32 0, %v2346
        %v2348 = vrot.slane %v2284, %v2347
        %v2365 = vmul.f32 %v2171, %v2288
        %v2366 = vmul.f32 %v2173, %v2292
        %v2367 = vmul.f32 %v2175, %v2296
        %v2368 = vmul.f32 %v2177, %v2300
        %v2369 = vmul.f32 %v2171, %v2304
        %v2370 = vmul.f32 %v2173, %v2308
        %v2371 = vmul.f32 %v2175, %v2312
        %v2372 = vmul.f32 %v2177, %v2316
        %v2373 = vmul.f32 %v2171, %v2320
        %v2374 = vmul.f32 %v2173, %v2324
        %v2375 = vmul.f32 %v2175, %v2328
        %v2376 = vmul.f32 %v2177, %v2332
        %v2377 = vmul.f32 %v2171, %v2336
        %v2378 = vmul.f32 %v2173, %v2340
        %v2379 = vmul.f32 %v2175, %v2344
        %v2380 = vmul.f32 %v2177, %v2348
        %v2381 = vsel %vm517, %v2365, 0.0
        %v2382 = vsel %vm517, %v2366, 0.0
        %v2383 = vadd.f32 %v2381, %v2382
        %v2384 = vsel %vm517, %v2367, 0.0
        %v2385 = vadd.f32 %v2383, %v2384
        %v2386 = vsel %vm517, %v2368, 0.0
        %v2387 = vadd.f32 %v2385, %v2386
        %v2388 = vsel %vm517, %v2369, 0.0
        %v2389 = vsel %vm517, %v2370, 0.0
        %v2390 = vadd.f32 %v2388, %v2389
        %v2391 = vsel %vm517, %v2371, 0.0
        %v2392 = vadd.f32 %v2390, %v2391
        %v2393 = vsel %vm517, %v2372, 0.0
        %v2394 = vadd.f32 %v2392, %v2393
        %v2395 = vsel %vm517, %v2373, 0.0
        %v2396 = vsel %vm517, %v2374, 0.0
        %v2397 = vadd.f32 %v2395, %v2396
        %v2398 = vsel %vm517, %v2375, 0.0
        %v2399 = vadd.f32 %v2397, %v2398
        %v2400 = vsel %vm517, %v2376, 0.0
        %v2401 = vadd.f32 %v2399, %v2400
        %v2402 = vsel %vm517, %v2377, 0.0
        %v2403 = vsel %vm517, %v2378, 0.0
        %v2404 = vadd.f32 %v2402, %v2403
        %v2405 = vsel %vm517, %v2379, 0.0
        %v2406 = vadd.f32 %v2404, %v2405
        %v2407 = vsel %vm517, %v2380, 0.0
        %v2408 = vadd.f32 %v2406, %v2407
        %v2409 = vrcp.pop %v2184
        %v2410 = vmul.f32 %v2387, %v2409
        %v2411 = vmul.f32 %v2394, %v2409
        %v2412 = vmul.f32 %v2401, %v2409
        %v2413 = vmul.f32 %v2408, %v2409
        %s2414 = sld [smem:[#allocation2 + $0x18]]
        %v2415 = vstv %s2414
        %v2416 = vmul.f32 %v2410, %v2415
        %s2417 = scalar_lea.vmem %s304, 96
        %2418 = vst [vmem:[%s2417] sm:$0xf] %v2416
        %s2419 = sld [smem:[#allocation2 + $0x19]]
        %v2420 = vstv %s2419
        %v2421 = vmul.f32 %v2410, %v2420
        %s2422 = scalar_lea.vmem %s304, 100
        %2423 = vst [vmem:[%s2422] sm:$0xf] %v2421
        %s2424 = sld [smem:[#allocation2 + $0x1a]]
        %v2425 = vstv %s2424
        %v2426 = vmul.f32 %v2411, %v2425
        %s2427 = scalar_lea.vmem %s304, 104
        %2428 = vst [vmem:[%s2427] sm:$0xf] %v2426
        %s2429 = sld [smem:[#allocation2 + $0x1b]]
        %v2430 = vstv %s2429
        %v2431 = vmul.f32 %v2411, %v2430
        %s2432 = scalar_lea.vmem %s304, 108
        %2433 = vst [vmem:[%s2432] sm:$0xf] %v2431
        %s2434 = sld [smem:[#allocation2 + $0x1c]]
        %v2435 = vstv %s2434
        %v2436 = vmul.f32 %v2412, %v2435
        %s2437 = scalar_lea.vmem %s304, 112
        %2438 = vst [vmem:[%s2437] sm:$0xf] %v2436
        %s2439 = sld [smem:[#allocation2 + $0x1d]]
        %v2440 = vstv %s2439
        %v2441 = vmul.f32 %v2412, %v2440
        %s2442 = scalar_lea.vmem %s304, 116
        %2443 = vst [vmem:[%s2442] sm:$0xf] %v2441
        %s2444 = sld [smem:[#allocation2 + $0x1e]]
        %v2445 = vstv %s2444
        %v2446 = vmul.f32 %v2413, %v2445
        %s2447 = scalar_lea.vmem %s304, 120
        %2448 = vst [vmem:[%s2447] sm:$0xf] %v2446
        %s2449 = sld [smem:[#allocation2 + $0x1f]]
        %v2450 = vstv %s2449
        %v2451 = vmul.f32 %v2413, %v2450
        %s2452 = scalar_lea.vmem %s304, 124
        %2453 = vst [vmem:[%s2452] sm:$0xf] %v2451
        %p2454 = scmp.lt.s32.totalorder %s20, 1
        %s2455 = scalar_select %p2454, %s20, 1
        %p2456 = scmp.lt.s32.totalorder %s21, 0
        %s2457 = scalar_select %p2456, %s21, 0
        %s2458 = smul.addr %s2455, 32
        %s2459 = sadd.s32 %s2457, %s2458
        %s2460 = smul.addr %s2459, 4
        %s2461 = scalar_lea.vmem %s4, %s2460
        // Predicated region
        $region41: #{tca_forward.1} parent=35 // pred_check
          %p2462 = pneg %p153
        $region42: #{tca_forward.1} parent=35 // pred_check_branch
          %2464 = sbr.rel (%p2462) target = $region44
        $region43: #{tca_forward.1} parent=35 // pred_region
          _
        $region44: #{tca_forward.1} parent=35 // pred_fallthru
          _
      $region36: #{tca_forward.1} parent=5 // pred_fallthru
        _
      %p2465 = scmp.le.s32.totalorder 2, %s11
      // Predicated region
      $region45: #{tca_forward.1} parent=5 // pred_check
        %p2466 = pneg %p2465
      $region46: #{tca_forward.1} parent=5 // pred_check_branch
        %2468 = sbr.rel (%p2466) target = $region48
      $region47: #{tca_forward.1} parent=5 // pred_region
        %s2469 = ssub.s32 %s11, 2
        // Predicated region
        $region49: #{tca_forward.1} parent=47 // pred_check
          %p2470 = pneg %p159
        $region50: #{tca_forward.1} parent=47 // pred_check_branch
          %2472 = sbr.rel (%p2470) target = $region52
        $region51: #{tca_forward.1} parent=47 // pred_region
          %p2473 = scmp.lt.s32.totalorder %s22, 1
          %s2474 = scalar_select %p2473, %s22, 1
          %p2475 = scmp.lt.s32.totalorder %s23, 0
          %s2476 = scalar_select %p2475, %s23, 0
          %s2477 = smul.addr %s2474, 32
          %s2478 = sadd.s32 %s2476, %s2477
          %s2479 = smul.addr %s2478, 4
          %s2480 = scalar_lea.vmem %s4, %s2479
        $region52: #{tca_forward.1} parent=47 // pred_fallthru
          _
      $region48: #{tca_forward.1} parent=5 // pred_fallthru
        _
    $region6: #{tca_forward.1} parent=1 // loop_footer
      %s15 = sadd.s32 1, %s11
    $region7: #{tca_forward.1} parent=1 // loop_footer_branch
      %10 = sbr.rel target = $region3
    $region8: #{tca_forward.1} parent=1 // loop_exit
      _
    %2481 = vsyncpa [#allocation3], 1
    %s2482 = scalar_lea.sflag [#allocation3], 1
    %2483 = vsyncpa %s2482, 1

</llo_original>
